<compile_context>
chip_gen: v6e
topology: v6e:2x2x1
jax: 0.10.0
libtpu: 0.0.40
codegen_flags: <defaults>
</compile_context>

<pallas_src>
import functools
import math

import jax
import jax.numpy as jnp
from jax.experimental import pallas as pl
from jax.experimental.pallas import tpu as pltpu


def _layernorm(x, w, b, eps=1e-5):
    mu = jnp.mean(x, axis=-1, keepdims=True)
    var = jnp.mean((x - mu) ** 2, axis=-1, keepdims=True)
    return (x - mu) * jax.lax.rsqrt(var + eps) * w + b


def fused_encoder_kernel(x_ref, wqkv_ref, wo_ref, w1_ref, w2_ref,
                         bqkv_ref, b1_ref, vecs_ref, o_ref,
                         *, n_heads, head_chunk, exp_bf16):
    bb, S, D = o_ref.shape
    H = n_heads
    dh = D // H
    hc = head_chunk
    M = bb * S

    # Layer 0 of each batch block: seed the resident activation. The output block is the
    # revisited accumulator across the layer grid axis -> stays in VMEM; HBM writeback
    # happens only after the last layer of this batch block.
    @pl.when(pl.program_id(1) == 0)
    def _():
        o_ref[...] = x_ref[...]

    x = o_ref[...].reshape(M, D)                       # (M, D) f32, resident

    vecs = vecs_ref[0]                                 # (6, D) packed small f32 params
    ln1w, ln1b = vecs[0:1, :], vecs[1:2, :]
    bo = vecs[2:3, :]
    ln2w, ln2b = vecs[3:4, :], vecs[4:5, :]
    b2 = vecs[5:6, :]

    # ---------------- self-attention block (pre-LN) ----------------
    # 1/sqrt(dh) is already folded into the Q rows of wqkv / bqkv at pack time.
    h = _layernorm(x, ln1w, ln1b)
    qkv = jax.lax.dot_general(
        h.astype(jnp.bfloat16), wqkv_ref[0],
        dimension_numbers=(((1,), (1,)), ((), ())),    # h @ Wqkv.T, no in-kernel transpose
        preferred_element_type=jnp.float32) + bqkv_ref[0]           # (M, 3D) f32

    wo = wo_ref[0]                                     # (D, D) bf16
    attn = None
    # Head-chunked attention: only a (bb*hc, S, S) score tile is live per chunk, and each
    # chunk contracts directly against the matching K-slice of wo (K = hc*dh), so there is
    # no per-head merge scratch and no masked partial-lane stores.
    for c in range(H // hc):
        h0 = c * hc * dh
        w = hc * dh

        def heads_major(cols):                         # (M, w) -> (bb*hc, S, dh)
            t = cols.reshape(bb, S, hc, dh)
            return jnp.transpose(t, (0, 2, 1, 3)).reshape(bb * hc, S, dh)

        qc = heads_major(qkv[:, h0:h0 + w]).astype(jnp.bfloat16)
        kc = heads_major(qkv[:, D + h0:D + h0 + w]).astype(jnp.bfloat16)
        vc = heads_major(qkv[:, 2 * D + h0:2 * D + h0 + w]).astype(jnp.bfloat16)

        s = jnp.einsum('bqd,bkd->bqk', qc, kc,
                       preferred_element_type=jnp.float32)          # (bb*hc, S, S) f32
        s = s - jnp.max(s, axis=-1, keepdims=True)
        if exp_bf16:                                                 # v6e / v7x: bf16 EUP
            p = jnp.exp(s.astype(jnp.bfloat16))
            l = jnp.sum(p, axis=-1, keepdims=True, dtype=jnp.float32)
        else:                                                        # v5e: f32 exp, cast once
            pf = jnp.exp(s)
            l = jnp.sum(pf, axis=-1, keepdims=True)
            p = pf.astype(jnp.bfloat16)

        ctx = jnp.einsum('bqk,bkd->bqd', p, vc,
                         preferred_element_type=jnp.float32)         # (bb*hc, S, dh) f32
        # Normalize AFTER the PV matmul: O(M*dh) multiplies instead of O(S^2).
        ctx = ctx * pl.reciprocal(l, approx=True)
        # One layout pass back to token-major, then partial output projection (K = hc*dh).
        ctx = jnp.transpose(ctx.reshape(bb, hc, S, dh), (0, 2, 1, 3)).reshape(M, w)
        part = jax.lax.dot_general(
            ctx.astype(jnp.bfloat16), wo[:, h0:h0 + w],
            dimension_numbers=(((1,), (1,)), ((), ())),
            preferred_element_type=jnp.float32)
        attn = part if attn is None else attn + part
    x = x + attn + bo

    # ---------------- feed-forward block (pre-LN) ----------------
    h2 = _layernorm(x, ln2w, ln2b)
    f = jax.lax.dot_general(
        h2.astype(jnp.bfloat16), w1_ref[0],
        dimension_numbers=(((1,), (1,)), ((), ())),
        preferred_element_type=jnp.float32) + b1_ref[0]
    f = jnp.maximum(f, 0.0)
    f = jax.lax.dot_general(
        f.astype(jnp.bfloat16), w2_ref[0],
        dimension_numbers=(((1,), (1,)), ((), ())),
        preferred_element_type=jnp.float32)
    o_ref[...] = (x + f + b2).reshape(bb, S, D)


# ---------------------------------------------------------------------------
# Chip-aware tiling
# ---------------------------------------------------------------------------
def _tpu_config():
    """(VMEM bytes per core, megacore chip?, bf16-exp path?) with safe fallbacks."""
    kind = ""
    try:
        kind = jax.devices()[0].device_kind.lower()
    except Exception:
        pass
    vmem = None
    try:
        vmem = int(pltpu.get_tpu_info().vmem_capacity_bytes)
    except Exception:
        vmem = None
    two_cores = ("v7" in kind) or ("7x" in kind)
    if vmem is None:
        vmem = (64 << 20) if two_cores else (128 << 20)
    exp_bf16 = any(t in kind for t in ("v6", "6e", "v7", "7x"))
    return vmem, two_cores, exp_bf16


def _pick_head_chunk(H, dh, S, bb, score_budget_bytes):
    """Largest head chunk (dividing H, lane-aligned when possible) whose score tile fits."""
    divisors = [h for h in range(1, H + 1) if H % h == 0]
    aligned = [h for h in divisors if (h * dh) % 128 == 0 or h == H] or divisors
    best = aligned[0]
    for h in aligned:
        if bb * h * S * S * 10 <= score_budget_bytes:   # f32 scores + bf16 probs + headroom
            best = max(best, h)
    return best


def _vmem_estimate(bb, S, D, dff, hc, dh):
    M = bb * S
    w_bytes = 2 * 2 * (3 * D * D + D * D + 2 * D * dff)     # bf16 weights, double-buffered
    vec_bytes = 2 * 4 * (9 * D + dff)                        # small f32 params, double-buffered
    act_bytes = 4 * 4 * M * D                                # x-in + resident o blocks (f32)
    inter_bytes = 4 * M * (3 * D + dff + 2 * D) + 2 * M * (3 * D + dff)
    score_bytes = bb * hc * S * S * 10
    return w_bytes + vec_bytes + act_bytes + inter_bytes + score_bytes


def _choose_tiling(B, S, D, dff, H, vmem_bytes, two_cores, target_rows=1024):
    """block_b targeting >= `target_rows` rows per block; >=2 parallel blocks only on v7x."""
    dh = D // H
    budget = int(vmem_bytes * 0.7)
    cap = B if (not two_cores or B < 2) else max(1, B // 2)
    target_bb = max(1, target_rows // S)
    best_bb = 1
    best_hc = _pick_head_chunk(H, dh, S, 1, budget // 3)
    for bb in range(1, B + 1):
        if B % bb or bb > cap or bb > target_bb:
            continue
        hc = _pick_head_chunk(H, dh, S, bb, budget // 3)
        if _vmem_estimate(bb, S, D, dff, hc, dh) <= budget:
            best_bb, best_hc = bb, hc
    return best_bb, best_hc


# ---------------------------------------------------------------------------
# Host-side wrapper
# ---------------------------------------------------------------------------
def fused_encoder(x, packed, n_heads, block_b=None, head_chunk=None,
                  vmem_limit_bytes=None):
    """Run all encoder layers in one pallas_call. x: (B, S, D) float32."""
    B, S, D = x.shape
    L, three_d, _ = packed["wqkv"].shape
    dff = packed["w1"].shape[1]
    H = n_heads
    dh = D // H
    assert three_d == 3 * D and D % H == 0

    vmem_bytes, two_cores, exp_bf16 = _tpu_config()
    auto_bb, auto_hc = _choose_tiling(B, S, D, dff, H, vmem_bytes, two_cores)
    block_b = auto_bb if block_b is None else block_b
    head_chunk = auto_hc if head_chunk is None else head_chunk
    assert B % block_b == 0 and H % head_chunk == 0
    if vmem_limit_bytes is None:
        vmem_limit_bytes = min(int(vmem_bytes * 0.85), 100 << 20)

    def xmap(b, l):
        return (b, 0, 0)

    def wmap(b, l):
        return (l, 0, 0)

    in_specs = [
        pl.BlockSpec((block_b, S, D), xmap),        # embeddings (read at layer 0 only)
        pl.BlockSpec((1, 3 * D, D), wmap),          # wqkv   (bf16, streamed per layer)
        pl.BlockSpec((1, D, D), wmap),              # wo
        pl.BlockSpec((1, dff, D), wmap),            # w1
        pl.BlockSpec((1, D, dff), wmap),            # w2
        pl.BlockSpec((1, 1, 3 * D), wmap),          # qkv bias (f32, q rows pre-scaled)
        pl.BlockSpec((1, 1, dff), wmap),            # ffn bias 1 (f32)
        pl.BlockSpec((1, 6, D), wmap),              # packed LN / bias vectors (f32)
    ]

    # Advisory cost hint so XLA schedules surrounding ops around this long fused call.
    flops = 2 * B * S * L * (4 * D * D + 2 * D * dff) + 4 * L * B * H * S * S * dh
    weight_bytes = L * (3 * D * D + D * D + 2 * D * dff) * 2 + L * (9 * D + dff) * 4
    cost = pl.CostEstimate(
        flops=int(flops),
        transcendentals=int(L * B * H * S * S),
        bytes_accessed=int(weight_bytes * (B // block_b) + 2 * B * S * D * 4))

    kernel = functools.partial(fused_encoder_kernel, n_heads=H,
                               head_chunk=head_chunk, exp_bf16=exp_bf16)
    return pl.pallas_call(
        kernel,
        out_shape=jax.ShapeDtypeStruct((B, S, D), jnp.float32),
        grid_spec=pltpu.PrefetchScalarGridSpec(
            num_scalar_prefetch=0,
            grid=(B // block_b, L),                 # batch blocks outer, layers inner
            in_specs=in_specs,
            out_specs=pl.BlockSpec((block_b, S, D), xmap),
        ),
        compiler_params=pltpu.CompilerParams(
            dimension_semantics=("parallel", "arbitrary"),
            vmem_limit_bytes=vmem_limit_bytes),
        cost_estimate=cost,
    )(x, packed["wqkv"], packed["wo"], packed["w1"], packed["w2"],
      packed["bqkv"], packed["b1"], packed["vecs"])


def init_params(key, vocab_size, d_model, n_layers, d_ff):
    keys = jax.random.split(key, 1 + n_layers)
    emb = jax.random.normal(keys[0], (vocab_size, d_model), jnp.float32) * 0.02
    layers = []
    for li in range(n_layers):
        lk = jax.random.split(keys[1 + li], 4)
        layers.append(dict(
            ln1w=jnp.ones((d_model,), jnp.float32),
            ln1b=jnp.zeros((d_model,), jnp.float32),
            inw=jax.random.normal(lk[0], (3 * d_model, d_model), jnp.float32) * 0.02,
            inb=jnp.zeros((3 * d_model,), jnp.float32),
            outw=jax.random.normal(lk[1], (d_model, d_model), jnp.float32) * 0.02,
            outb=jnp.zeros((d_model,), jnp.float32),
            ln2w=jnp.ones((d_model,), jnp.float32),
            ln2b=jnp.zeros((d_model,), jnp.float32),
            w1=jax.random.normal(lk[2], (d_ff, d_model), jnp.float32) * 0.02,
            b1=jnp.zeros((d_ff,), jnp.float32),
            w2=jax.random.normal(lk[3], (d_model, d_ff), jnp.float32) * 0.02,
            b2=jnp.zeros((d_model,), jnp.float32),
        ))
    return emb, layers


def pack_params(layers, n_heads):
    """Stack per-layer params layer-major: bf16 matmul weights (1/sqrt(dh) folded into the
    Q rows of the fused QKV projection), packed f32 vectors."""
    d_model = layers[0]["ln1w"].shape[0]
    dh = d_model // n_heads
    scale = 1.0 / math.sqrt(dh)
    qscale = jnp.concatenate([jnp.full((d_model,), scale, jnp.float32),
                              jnp.ones((2 * d_model,), jnp.float32)])

    def st(name):
        return jnp.stack([p[name] for p in layers], axis=0)

    wqkv = st("inw") * qscale[None, :, None]                 # (L, 3D, D)
    bqkv = st("inb") * qscale[None, :]                       # (L, 3D)
    vecs = jnp.stack([jnp.stack([p["ln1w"], p["ln1b"], p["outb"],
                                 p["ln2w"], p["ln2b"], p["b2"]], axis=0)
                      for p in layers], axis=0)              # (L, 6, D) f32
    return dict(
        wqkv=wqkv.astype(jnp.bfloat16),                      # (L, 3D, D)
        wo=st("outw").astype(jnp.bfloat16),                  # (L, D, D)
        w1=st("w1").astype(jnp.bfloat16),                    # (L, dff, D)
        w2=st("w2").astype(jnp.bfloat16),                    # (L, D, dff)
        bqkv=bqkv[:, None, :],                               # (L, 1, 3D) f32
        b1=st("b1")[:, None, :],                             # (L, 1, dff) f32
        vecs=vecs,                                           # (L, 6, D) f32
    )


def atacformer_forward(tokens, emb, packed, n_heads, mask=None, block_b=None):
    # TODO(synk): src_key_padding_mask is not implemented (reference call uses mask=None).
    x = jnp.take(emb, tokens, axis=0)                        # embedding lookup (plain gather)
    # positional embeddings are identically zero -> "x + zeros_like(x)" is a no-op
    return fused_encoder(x.astype(jnp.float32), packed, n_heads, block_b=block_b)


if __name__ == "__main__":
    vocab_size = 100
    d_model = 32          # real model default 768 (128-aligned); small test shape here
    n_heads = 4
    n_layers = 2
    d_ff = 64
    B, S = 2, 8

    key = jax.random.PRNGKey(0)
    k_tok, k_par = jax.random.split(key)
    tokens = jax.random.randint(k_tok, (B, S), 0, vocab_size, dtype=jnp.int32)
    emb, layers = init_params(k_par, vocab_size, d_model, n_layers, d_ff)
    packed = pack_params(layers, n_heads)

    out = atacformer_forward(tokens, emb, packed, n_heads)
    out = jax.block_until_ready(out)
    assert out.shape == (B, S, d_model)
    assert bool(jnp.all(jnp.isfinite(out)))
    print("KERNEL_OK")
</pallas_src>

<mosaic_0001>
module attributes {stable_mosaic.version = 11 : i64} {
  func.func @fused_encoder_kernel(%arg0: i32, %arg1: i32, %arg2: memref<2x8x32xf32, #tpu.memory_space<vmem>>, %arg3: memref<1x96x32xbf16, #tpu.memory_space<vmem>>, %arg4: memref<1x32x32xbf16, #tpu.memory_space<vmem>>, %arg5: memref<1x64x32xbf16, #tpu.memory_space<vmem>>, %arg6: memref<1x32x64xbf16, #tpu.memory_space<vmem>>, %arg7: memref<1x1x96xf32, #tpu.memory_space<vmem>>, %arg8: memref<1x1x64xf32, #tpu.memory_space<vmem>>, %arg9: memref<1x6x32xf32, #tpu.memory_space<vmem>>, %arg10: memref<2x8x32xf32, #tpu.memory_space<vmem>>) attributes {dimension_semantics = [#tpu.dimension_semantics<parallel>, #tpu.dimension_semantics<arbitrary>], iteration_bounds = array<i64: 1, 2>, scalar_prefetch = 0 : i64, scratch_operands = 0 : i64, tpu.core_type = #tpu.core_type<tc>, window_params = [{transform_indices = @transform_0, window_bounds = array<i64: 2, 8, 32>}, {transform_indices = @transform_1, window_bounds = array<i64: 1, 96, 32>}, {transform_indices = @transform_2, window_bounds = array<i64: 1, 32, 32>}, {transform_indices = @transform_3, window_bounds = array<i64: 1, 64, 32>}, {transform_indices = @transform_4, window_bounds = array<i64: 1, 32, 64>}, {transform_indices = @transform_5, window_bounds = array<i64: 1, 1, 96>}, {transform_indices = @transform_6, window_bounds = array<i64: 1, 1, 64>}, {transform_indices = @transform_7, window_bounds = array<i64: 1, 6, 32>}, {transform_indices = @transform_8, window_bounds = array<i64: 2, 8, 32>}]} {
    %c0_i32 = arith.constant 0 : i32
    %0 = arith.cmpi eq, %arg1, %c0_i32 : i32
    %1 = arith.extui %0 : i1 to i32
    %c0_i32_0 = arith.constant 0 : i32
    %2 = arith.cmpi ne, %1, %c0_i32_0 : i32
    scf.if %2 {
      %c0_45 = arith.constant 0 : index
      %c0_46 = arith.constant 0 : index
      %c0_47 = arith.constant 0 : index
      %122 = vector.load %arg2[%c0_45, %c0_46, %c0_47] : memref<2x8x32xf32, #tpu.memory_space<vmem>>, vector<2x8x32xf32>
      %c0_48 = arith.constant 0 : index
      %c0_49 = arith.constant 0 : index
      %c0_50 = arith.constant 0 : index
      %123 = vector.load %arg10[%c0_48, %c0_49, %c0_50] : memref<2x8x32xf32, #tpu.memory_space<vmem>>, vector<2x8x32xf32>
      tpu.vector_store %arg10[%c0_48, %c0_49, %c0_50], %122 {strides = array<i32>} : memref<2x8x32xf32, #tpu.memory_space<vmem>>, vector<2x8x32xf32>,
    } else {
    }
    %c0 = arith.constant 0 : index
    %c0_1 = arith.constant 0 : index
    %c0_2 = arith.constant 0 : index
    %3 = vector.load %arg10[%c0, %c0_1, %c0_2] : memref<2x8x32xf32, #tpu.memory_space<vmem>>, vector<2x8x32xf32>
    %4 = vector.shape_cast %3 : vector<2x8x32xf32> to vector<16x32xf32>
    %c0_3 = arith.constant 0 : index
    %c0_4 = arith.constant 0 : index
    %c0_5 = arith.constant 0 : index
    %5 = vector.load %arg9[%c0_3, %c0_4, %c0_5] : memref<1x6x32xf32, #tpu.memory_space<vmem>>, vector<1x6x32xf32>
    %6 = vector.shape_cast %5 : vector<1x6x32xf32> to vector<6x32xf32>
    %7 = vector.extract_strided_slice %6 {offsets = [0, 0], sizes = [1, 32], strides = [1, 1]} : vector<6x32xf32> to vector<1x32xf32>
    %8 = vector.extract_strided_slice %6 {offsets = [1, 0], sizes = [1, 32], strides = [1, 1]} : vector<6x32xf32> to vector<1x32xf32>
    %9 = vector.extract_strided_slice %6 {offsets = [2, 0], sizes = [1, 32], strides = [1, 1]} : vector<6x32xf32> to vector<1x32xf32>
    %10 = vector.extract_strided_slice %6 {offsets = [3, 0], sizes = [1, 32], strides = [1, 1]} : vector<6x32xf32> to vector<1x32xf32>
    %11 = vector.extract_strided_slice %6 {offsets = [4, 0], sizes = [1, 32], strides = [1, 1]} : vector<6x32xf32> to vector<1x32xf32>
    %12 = vector.extract_strided_slice %6 {offsets = [5, 0], sizes = [1, 32], strides = [1, 1]} : vector<6x32xf32> to vector<1x32xf32>
    %cst = arith.constant dense<0.000000e+00> : vector<16xf32>
    %13 = vector.multi_reduction <add>, %4, %cst [1] : vector<16x32xf32> to vector<16xf32>
    %14 = vector.shape_cast %13 : vector<16xf32> to vector<16x1xf32>
    %cst_6 = arith.constant 3.200000e+01 : f32
    %15 = vector.broadcast %cst_6 : f32 to vector<16x1xf32>
    %16 = arith.divf %14, %15 : vector<16x1xf32>
    %17 = vector.broadcast %16 : vector<16x1xf32> to vector<16x32xf32>
    %18 = arith.subf %4, %17 : vector<16x32xf32>
    %19 = arith.mulf %18, %18 : vector<16x32xf32>
    %cst_7 = arith.constant dense<0.000000e+00> : vector<16xf32>
    %20 = vector.multi_reduction <add>, %19, %cst_7 [1] : vector<16x32xf32> to vector<16xf32>
    %21 = vector.shape_cast %20 : vector<16xf32> to vector<16x1xf32>
    %cst_8 = arith.constant 3.200000e+01 : f32
    %22 = vector.broadcast %cst_8 : f32 to vector<16x1xf32>
    %23 = arith.divf %21, %22 : vector<16x1xf32>
    %24 = vector.broadcast %16 : vector<16x1xf32> to vector<16x32xf32>
    %25 = arith.subf %4, %24 : vector<16x32xf32>
    %cst_9 = arith.constant 9.99999974E-6 : f32
    %26 = vector.broadcast %cst_9 : f32 to vector<16x1xf32>
    %27 = arith.addf %23, %26 : vector<16x1xf32>
    %28 = math.rsqrt %27 : vector<16x1xf32>
    %29 = vector.broadcast %28 : vector<16x1xf32> to vector<16x32xf32>
    %30 = arith.mulf %25, %29 : vector<16x32xf32>
    %31 = vector.broadcast %7 : vector<1x32xf32> to vector<16x32xf32>
    %32 = arith.mulf %30, %31 : vector<16x32xf32>
    %33 = vector.broadcast %8 : vector<1x32xf32> to vector<16x32xf32>
    %34 = arith.addf %32, %33 : vector<16x32xf32>
    %35 = arith.truncf %34 : vector<16x32xf32> to vector<16x32xbf16>
    %c0_10 = arith.constant 0 : index
    %c0_11 = arith.constant 0 : index
    %c0_12 = arith.constant 0 : index
    %36 = vector.load %arg3[%c0_10, %c0_11, %c0_12] : memref<1x96x32xbf16, #tpu.memory_space<vmem>>, vector<1x96x32xbf16>
    %37 = vector.shape_cast %36 : vector<1x96x32xbf16> to vector<96x32xbf16>
    %cst_13 = arith.constant dense<0.000000e+00> : vector<16x96xf32>
    %38 = tpu.matmul %35, %37, %cst_13 {dimension_numbers = #tpu.dot_dimension_numbers<[1], [1], [0], [0], [0, 0, 1, 0], [], []>} : vector<16x32xbf16>, vector<96x32xbf16>, vector<16x96xf32> -> vector<16x96xf32>
    %c0_14 = arith.constant 0 : index
    %c0_15 = arith.constant 0 : index
    %c0_16 = arith.constant 0 : index
    %39 = vector.load %arg7[%c0_14, %c0_15, %c0_16] : memref<1x1x96xf32, #tpu.memory_space<vmem>>, vector<1x1x96xf32>
    %40 = vector.shape_cast %39 : vector<1x1x96xf32> to vector<1x96xf32>
    %41 = vector.broadcast %40 : vector<1x96xf32> to vector<16x96xf32>
    %42 = arith.addf %38, %41 : vector<16x96xf32>
    %c0_17 = arith.constant 0 : index
    %c0_18 = arith.constant 0 : index
    %c0_19 = arith.constant 0 : index
    %43 = vector.load %arg4[%c0_17, %c0_18, %c0_19] : memref<1x32x32xbf16, #tpu.memory_space<vmem>>, vector<1x32x32xbf16>
    %44 = vector.shape_cast %43 : vector<1x32x32xbf16> to vector<32x32xbf16>
    %45 = vector.extract_strided_slice %42 {offsets = [0, 0], sizes = [16, 32], strides = [1, 1]} : vector<16x96xf32> to vector<16x32xf32>
    %46 = vector.shape_cast %45 : vector<16x32xf32> to vector<2x8x4x8xf32>
    %47 = tpu.transpose %46, [0, 2, 1, 3] : vector<2x8x4x8xf32> -> vector<2x4x8x8xf32>
    %48 = vector.shape_cast %47 : vector<2x4x8x8xf32> to vector<8x8x8xf32>
    %49 = arith.truncf %48 : vector<8x8x8xf32> to vector<8x8x8xbf16>
    %50 = vector.extract_strided_slice %42 {offsets = [0, 32], sizes = [16, 32], strides = [1, 1]} : vector<16x96xf32> to vector<16x32xf32>
    %51 = vector.shape_cast %50 : vector<16x32xf32> to vector<2x8x4x8xf32>
    %52 = tpu.transpose %51, [0, 2, 1, 3] : vector<2x8x4x8xf32> -> vector<2x4x8x8xf32>
    %53 = vector.shape_cast %52 : vector<2x4x8x8xf32> to vector<8x8x8xf32>
    %54 = arith.truncf %53 : vector<8x8x8xf32> to vector<8x8x8xbf16>
    %55 = vector.extract_strided_slice %42 {offsets = [0, 64], sizes = [16, 32], strides = [1, 1]} : vector<16x96xf32> to vector<16x32xf32>
    %56 = vector.shape_cast %55 : vector<16x32xf32> to vector<2x8x4x8xf32>
    %57 = tpu.transpose %56, [0, 2, 1, 3] : vector<2x8x4x8xf32> -> vector<2x4x8x8xf32>
    %58 = vector.shape_cast %57 : vector<2x4x8x8xf32> to vector<8x8x8xf32>
    %59 = arith.truncf %58 : vector<8x8x8xf32> to vector<8x8x8xbf16>
    "tpu.trace_start"() <{level = 10 : i32, message = "bqd,bkd->bqk"}> : () -> ()
    %cst_20 = arith.constant dense<0.000000e+00> : vector<8x8x8xf32>
    %60 = tpu.matmul %49, %54, %cst_20 {dimension_numbers = #tpu.dot_dimension_numbers<[2], [2], [1], [1], [0, 0, 0, 1, 1, 1], [0], [0]>} : vector<8x8x8xbf16>, vector<8x8x8xbf16>, vector<8x8x8xf32> -> vector<8x8x8xf32>
    "tpu.trace_stop"() : () -> ()
    %cst_21 = arith.constant dense<0xFF800000> : vector<8x8xf32>
    %61 = vector.multi_reduction <maximumf>, %60, %cst_21 [2] : vector<8x8x8xf32> to vector<8x8xf32>
    %62 = vector.shape_cast %61 : vector<8x8xf32> to vector<8x8x1xf32>
    %63 = vector.broadcast %62 : vector<8x8x1xf32> to vector<8x8x8xf32>
    %64 = arith.subf %60, %63 : vector<8x8x8xf32>
    %65 = math.exp %64 : vector<8x8x8xf32>
    %cst_22 = arith.constant dense<0.000000e+00> : vector<8x8xf32>
    %66 = vector.multi_reduction <add>, %65, %cst_22 [2] : vector<8x8x8xf32> to vector<8x8xf32>
    %67 = vector.shape_cast %66 : vector<8x8xf32> to vector<8x8x1xf32>
    %68 = arith.truncf %65 : vector<8x8x8xf32> to vector<8x8x8xbf16>
    "tpu.trace_start"() <{level = 10 : i32, message = "bqk,bkd->bqd"}> : () -> ()
    %cst_23 = arith.constant dense<0.000000e+00> : vector<8x8x8xf32>
    %69 = tpu.matmul %68, %59, %cst_23 {dimension_numbers = #tpu.dot_dimension_numbers<[2], [1], [1], [2], [0, 0, 0, 1, 1, 2], [0], [0]>} : vector<8x8x8xbf16>, vector<8x8x8xbf16>, vector<8x8x8xf32> -> vector<8x8x8xf32>
    "tpu.trace_stop"() : () -> ()
    %70 = tpu.reciprocal %67 {approx = true} : vector<8x8x1xf32> -> vector<8x8x1xf32>
    %71 = vector.broadcast %70 : vector<8x8x1xf32> to vector<8x8x8xf32>
    %72 = arith.mulf %69, %71 : vector<8x8x8xf32>
    %73 = vector.shape_cast %72 : vector<8x8x8xf32> to vector<2x4x8x8xf32>
    %74 = tpu.transpose %73, [0, 2, 1, 3] : vector<2x4x8x8xf32> -> vector<2x8x4x8xf32>
    %75 = vector.shape_cast %74 : vector<2x8x4x8xf32> to vector<16x32xf32>
    %76 = arith.truncf %75 : vector<16x32xf32> to vector<16x32xbf16>
    %cst_24 = arith.constant dense<0.000000e+00> : vector<16x32xf32>
    %77 = tpu.matmul %76, %44, %cst_24 {dimension_numbers = #tpu.dot_dimension_numbers<[1], [1], [0], [0], [0, 0, 1, 0], [], []>} : vector<16x32xbf16>, vector<32x32xbf16>, vector<16x32xf32> -> vector<16x32xf32>
    %78 = arith.addf %4, %77 : vector<16x32xf32>
    %79 = vector.broadcast %9 : vector<1x32xf32> to vector<16x32xf32>
    %80 = arith.addf %78, %79 : vector<16x32xf32>
    %cst_25 = arith.constant dense<0.000000e+00> : vector<16xf32>
    %81 = vector.multi_reduction <add>, %80, %cst_25 [1] : vector<16x32xf32> to vector<16xf32>
    %82 = vector.shape_cast %81 : vector<16xf32> to vector<16x1xf32>
    %cst_26 = arith.constant 3.200000e+01 : f32
    %83 = vector.broadcast %cst_26 : f32 to vector<16x1xf32>
    %84 = arith.divf %82, %83 : vector<16x1xf32>
    %85 = vector.broadcast %84 : vector<16x1xf32> to vector<16x32xf32>
    %86 = arith.subf %80, %85 : vector<16x32xf32>
    %87 = arith.mulf %86, %86 : vector<16x32xf32>
    %cst_27 = arith.constant dense<0.000000e+00> : vector<16xf32>
    %88 = vector.multi_reduction <add>, %87, %cst_27 [1] : vector<16x32xf32> to vector<16xf32>
    %89 = vector.shape_cast %88 : vector<16xf32> to vector<16x1xf32>
    %cst_28 = arith.constant 3.200000e+01 : f32
    %90 = vector.broadcast %cst_28 : f32 to vector<16x1xf32>
    %91 = arith.divf %89, %90 : vector<16x1xf32>
    %92 = vector.broadcast %84 : vector<16x1xf32> to vector<16x32xf32>
    %93 = arith.subf %80, %92 : vector<16x32xf32>
    %cst_29 = arith.constant 9.99999974E-6 : f32
    %94 = vector.broadcast %cst_29 : f32 to vector<16x1xf32>
    %95 = arith.addf %91, %94 : vector<16x1xf32>
    %96 = math.rsqrt %95 : vector<16x1xf32>
    %97 = vector.broadcast %96 : vector<16x1xf32> to vector<16x32xf32>
    %98 = arith.mulf %93, %97 : vector<16x32xf32>
    %99 = vector.broadcast %10 : vector<1x32xf32> to vector<16x32xf32>
    %100 = arith.mulf %98, %99 : vector<16x32xf32>
    %101 = vector.broadcast %11 : vector<1x32xf32> to vector<16x32xf32>
    %102 = arith.addf %100, %101 : vector<16x32xf32>
    %103 = arith.truncf %102 : vector<16x32xf32> to vector<16x32xbf16>
    %c0_30 = arith.constant 0 : index
    %c0_31 = arith.constant 0 : index
    %c0_32 = arith.constant 0 : index
    %104 = vector.load %arg5[%c0_30, %c0_31, %c0_32] : memref<1x64x32xbf16, #tpu.memory_space<vmem>>, vector<1x64x32xbf16>
    %105 = vector.shape_cast %104 : vector<1x64x32xbf16> to vector<64x32xbf16>
    %cst_33 = arith.constant dense<0.000000e+00> : vector<16x64xf32>
    %106 = tpu.matmul %103, %105, %cst_33 {dimension_numbers = #tpu.dot_dimension_numbers<[1], [1], [0], [0], [0, 0, 1, 0], [], []>} : vector<16x32xbf16>, vector<64x32xbf16>, vector<16x64xf32> -> vector<16x64xf32>
    %c0_34 = arith.constant 0 : index
    %c0_35 = arith.constant 0 : index
    %c0_36 = arith.constant 0 : index
    %107 = vector.load %arg8[%c0_34, %c0_35, %c0_36] : memref<1x1x64xf32, #tpu.memory_space<vmem>>, vector<1x1x64xf32>
    %108 = vector.shape_cast %107 : vector<1x1x64xf32> to vector<1x64xf32>
    %109 = vector.broadcast %108 : vector<1x64xf32> to vector<16x64xf32>
    %110 = arith.addf %106, %109 : vector<16x64xf32>
    %cst_37 = arith.constant 0.000000e+00 : f32
    %111 = vector.broadcast %cst_37 : f32 to vector<16x64xf32>
    %112 = arith.maximumf %110, %111 : vector<16x64xf32>
    %113 = arith.truncf %112 : vector<16x64xf32> to vector<16x64xbf16>
    %c0_38 = arith.constant 0 : index
    %c0_39 = arith.constant 0 : index
    %c0_40 = arith.constant 0 : index
    %114 = vector.load %arg6[%c0_38, %c0_39, %c0_40] : memref<1x32x64xbf16, #tpu.memory_space<vmem>>, vector<1x32x64xbf16>
    %115 = vector.shape_cast %114 : vector<1x32x64xbf16> to vector<32x64xbf16>
    %cst_41 = arith.constant dense<0.000000e+00> : vector<16x32xf32>
    %116 = tpu.matmul %113, %115, %cst_41 {dimension_numbers = #tpu.dot_dimension_numbers<[1], [1], [0], [0], [0, 0, 1, 0], [], []>} : vector<16x64xbf16>, vector<32x64xbf16>, vector<16x32xf32> -> vector<16x32xf32>
    %117 = arith.addf %80, %116 : vector<16x32xf32>
    %118 = vector.broadcast %12 : vector<1x32xf32> to vector<16x32xf32>
    %119 = arith.addf %117, %118 : vector<16x32xf32>
    %120 = vector.shape_cast %119 : vector<16x32xf32> to vector<2x8x32xf32>
    %c0_42 = arith.constant 0 : index
    %c0_43 = arith.constant 0 : index
    %c0_44 = arith.constant 0 : index
    %121 = vector.load %arg10[%c0_42, %c0_43, %c0_44] : memref<2x8x32xf32, #tpu.memory_space<vmem>>, vector<2x8x32xf32>
    tpu.vector_store %arg10[%c0_42, %c0_43, %c0_44], %120 {strides = array<i32>} : memref<2x8x32xf32, #tpu.memory_space<vmem>>, vector<2x8x32xf32>,
    return
  }
  func.func @transform_0(%arg0: i32, %arg1: i32) -> (i32, i32, i32) {
    %c0_i32 = arith.constant 0 : i32
    %c0_i32_0 = arith.constant 0 : i32
    %c0_i32_1 = arith.constant 0 : i32
    return %arg0, %c0_i32, %c0_i32_0 : i32, i32, i32
  }
  func.func @transform_1(%arg0: i32, %arg1: i32) -> (i32, i32, i32) {
    %c0_i32 = arith.constant 0 : i32
    %c0_i32_0 = arith.constant 0 : i32
    %c0_i32_1 = arith.constant 0 : i32
    return %arg1, %c0_i32, %c0_i32_0 : i32, i32, i32
  }
  func.func @transform_2(%arg0: i32, %arg1: i32) -> (i32, i32, i32) {
    %c0_i32 = arith.constant 0 : i32
    %c0_i32_0 = arith.constant 0 : i32
    %c0_i32_1 = arith.constant 0 : i32
    return %arg1, %c0_i32, %c0_i32_0 : i32, i32, i32
  }
  func.func @transform_3(%arg0: i32, %arg1: i32) -> (i32, i32, i32) {
    %c0_i32 = arith.constant 0 : i32
    %c0_i32_0 = arith.constant 0 : i32
    %c0_i32_1 = arith.constant 0 : i32
    return %arg1, %c0_i32, %c0_i32_0 : i32, i32, i32
  }
  func.func @transform_4(%arg0: i32, %arg1: i32) -> (i32, i32, i32) {
    %c0_i32 = arith.constant 0 : i32
    %c0_i32_0 = arith.constant 0 : i32
    %c0_i32_1 = arith.constant 0 : i32
    return %arg1, %c0_i32, %c0_i32_0 : i32, i32, i32
  }
  func.func @transform_5(%arg0: i32, %arg1: i32) -> (i32, i32, i32) {
    %c0_i32 = arith.constant 0 : i32
    %c0_i32_0 = arith.constant 0 : i32
    %c0_i32_1 = arith.constant 0 : i32
    return %arg1, %c0_i32, %c0_i32_0 : i32, i32, i32
  }
  func.func @transform_6(%arg0: i32, %arg1: i32) -> (i32, i32, i32) {
    %c0_i32 = arith.constant 0 : i32
    %c0_i32_0 = arith.constant 0 : i32
    %c0_i32_1 = arith.constant 0 : i32
    return %arg1, %c0_i32, %c0_i32_0 : i32, i32, i32
  }
  func.func @transform_7(%arg0: i32, %arg1: i32) -> (i32, i32, i32) {
    %c0_i32 = arith.constant 0 : i32
    %c0_i32_0 = arith.constant 0 : i32
    %c0_i32_1 = arith.constant 0 : i32
    return %arg1, %c0_i32, %c0_i32_0 : i32, i32, i32
  }
  func.func @transform_8(%arg0: i32, %arg1: i32) -> (i32, i32, i32) {
    %c0_i32 = arith.constant 0 : i32
    %c0_i32_0 = arith.constant 0 : i32
    %c0_i32_1 = arith.constant 0 : i32
    return %arg0, %c0_i32, %c0_i32_0 : i32, i32, i32
  }
}

</mosaic_0001>

<llo_original>
// kernel: tpu_custom_call.1
$region0: #{tpu_custom_call.1}
  #allocation0 [shape = 'u32[]', space=smem, size = 0x4, offset = 0x4, fixed_abs, tag = 'smem constant byte address 0x4 - core index']
  #allocation1 [shape = 'u32[144,128]{1,0:T(1,128)}', space=vmem, size = 0x12000, scoped, tag = 'internal scratch']
  %s0 = inlined_call_operand.vmem [shape: f32[2,8,32], index: 0, kind: input, shape index: {}]
  %s1 = inlined_call_operand.vmem [shape: bf16[2,96,32], index: 1, kind: input, shape index: {}]
  %s2 = inlined_call_operand.vmem [shape: bf16[2,32,32], index: 2, kind: input, shape index: {}]
  %s3 = inlined_call_operand.vmem [shape: bf16[2,64,32], index: 3, kind: input, shape index: {}]
  %s4 = inlined_call_operand.vmem [shape: bf16[2,32,64], index: 4, kind: input, shape index: {}]
  %s5 = inlined_call_operand.vmem [shape: f32[2,1,96], index: 5, kind: input, shape index: {}]
  %s6 = inlined_call_operand.vmem [shape: f32[2,1,64], index: 6, kind: input, shape index: {}]
  %s7 = inlined_call_operand.vmem [shape: f32[2,6,32], index: 7, kind: input, shape index: {}]
  %s8 = inlined_call_operand.hbm [shape: f32[2,8,32], index: 8, kind: output, shape index: {}]
  %s9 = sld [smem:[#allocation0]]
  $region69: #{tpu_custom_call.1} parent=0
    _
  %s11 = ssub.s32 1, %s9
  %s12 = scalar_select 0, %s11, %s9
  $region1: #{tpu_custom_call.1} parent=0
    #allocation2 [shape = 'u8[8192]{0}', space=vmem, size = 0x2000, scoped, tag = 'output window, operand 0, single buffered']
    #allocation3 [shape = 's32[2]{0}', space=sflag, size = 0x8, scoped, tag = 'scoped memory for tpu_custom_call.1']
    %13 = vsyncpa [#allocation3], 0
    loop: start=0, step=1, limit=4
    $region2: #{tpu_custom_call.1} parent=1 // loop_pre_header
      _
    $region3: #{tpu_custom_call.1} parent=1 // loop_header
      %s15 = sphi 0, %s19
      %p16 = scmp.ge.s32.totalorder %s15, 4
      %s22 = sphi 0, %s34
      %s23 = sphi 0, %s30
      %s24 = sphi 0, %s22
      %s25 = sphi 0, %s23
      %s26 = sphi 0, %s24
      %s27 = sphi 0, %s25
      %s37 = sphi 0, %s39
      %s40 = sphi 0, %s37
      %s41 = sphi 0, %s40
      %s57 = sphi 0, %s41
      %s63 = sphi 0, %s65
      %s66 = sphi 0, %s63
      %s67 = sphi 0, %s66
      %s83 = sphi 0, %s67
      %s89 = sphi 0, %s91
      %s92 = sphi 0, %s89
      %s93 = sphi 0, %s92
      %s109 = sphi 0, %s93
      %s115 = sphi 0, %s117
      %s118 = sphi 0, %s115
      %s119 = sphi 0, %s118
      %s135 = sphi 0, %s119
      %s141 = sphi 0, %s143
      %s144 = sphi 0, %s141
      %s145 = sphi 0, %s144
      %s161 = sphi 0, %s145
      %s167 = sphi 0, %s169
      %s170 = sphi 0, %s167
      %s171 = sphi 0, %s170
      %s187 = sphi 0, %s171
      %s193 = sphi 0, %s195
      %s196 = sphi 0, %s193
      %s197 = sphi 0, %s196
      %s213 = sphi 0, %s197
      %s219 = sphi 0, %s221
      %s222 = sphi 0, %s219
      %s223 = sphi 0, %s222
      %s239 = sphi 0, %s223
      %s245 = sphi 0, %s247
      %s248 = sphi 0, %s245
      %s249 = sphi 0, %s248
      %s265 = sphi 0, %s249
    $region4: #{tpu_custom_call.1} parent=1 // loop_header_branch
      %18 = sbr.rel (%p16) target = $region8
    $region5: #{tpu_custom_call.1} parent=1 // loop_body
      %s20 = ssub.s32 %s15, 1
      %s21 = ssub.s32 %s15, 2
      %s28 = sadd.s32 1, %s23
      %p29 = scmp.ge.s32.totalorder %s28, 2
      %s30 = scalar_select %p29, 0, %s28
      %s31 = sadd.s32 1, %s22
      %s32 = scalar_select %p29, %s31, %s22
      %p33 = scmp.ge.s32.totalorder %s32, 1
      %s34 = scalar_select %p33, 0, %s32
      %s35 = ssub.s32 %s22, %s34
      %p36 = scmp.eq.s32.totalorder %s35, 0
      %s38 = sadd.s32 %s37, 1
      %s39 = scalar_select %p36, %s37, %s38
      %p42 = pneg %p36
      %p43 = scmp.eq.s32.totalorder %s15, 1
      %p44 = por %p42, %p43
      %p45 = scmp.ne.s32.totalorder %s37, %s40
      %p46 = scmp.eq.s32.totalorder %s15, 0
      %p47 = por %p45, %p46
      %p48 = scmp.ne.s32.totalorder %s37, %s40
      %p49 = scmp.eq.s32.totalorder %s20, 1
      %p50 = por %p48, %p49
      %p51 = scmp.ne.s32.totalorder %s40, %s41
      %p52 = scmp.eq.s32.totalorder %s20, 0
      %p53 = por %p51, %p52
      %p54 = scmp.ne.s32.totalorder %s40, %s41
      %p55 = scmp.eq.s32.totalorder %s21, 1
      %p56 = por %p54, %p55
      %p58 = scmp.ne.s32.totalorder %s41, %s57
      %p59 = scmp.eq.s32.totalorder %s21, 0
      %p60 = por %p58, %p59
      %s61 = ssub.s32 %s23, %s30
      %p62 = scmp.eq.s32.totalorder %s61, 0
      %s64 = sadd.s32 %s63, 1
      %s65 = scalar_select %p62, %s63, %s64
      %p68 = pneg %p62
      %p69 = scmp.eq.s32.totalorder %s15, 1
      %p70 = por %p68, %p69
      %p71 = scmp.ne.s32.totalorder %s63, %s66
      %p72 = scmp.eq.s32.totalorder %s15, 0
      %p73 = por %p71, %p72
      %p74 = scmp.ne.s32.totalorder %s63, %s66
      %p75 = scmp.eq.s32.totalorder %s20, 1
      %p76 = por %p74, %p75
      %p77 = scmp.ne.s32.totalorder %s66, %s67
      %p78 = scmp.eq.s32.totalorder %s20, 0
      %p79 = por %p77, %p78
      %p80 = scmp.ne.s32.totalorder %s66, %s67
      %p81 = scmp.eq.s32.totalorder %s21, 1
      %p82 = por %p80, %p81
      %p84 = scmp.ne.s32.totalorder %s67, %s83
      %p85 = scmp.eq.s32.totalorder %s21, 0
      %p86 = por %p84, %p85
      %s87 = ssub.s32 %s23, %s30
      %p88 = scmp.eq.s32.totalorder %s87, 0
      %s90 = sadd.s32 %s89, 1
      %s91 = scalar_select %p88, %s89, %s90
      %p94 = pneg %p88
      %p95 = scmp.eq.s32.totalorder %s15, 1
      %p96 = por %p94, %p95
      %p97 = scmp.ne.s32.totalorder %s89, %s92
      %p98 = scmp.eq.s32.totalorder %s15, 0
      %p99 = por %p97, %p98
      %p100 = scmp.ne.s32.totalorder %s89, %s92
      %p101 = scmp.eq.s32.totalorder %s20, 1
      %p102 = por %p100, %p101
      %p103 = scmp.ne.s32.totalorder %s92, %s93
      %p104 = scmp.eq.s32.totalorder %s20, 0
      %p105 = por %p103, %p104
      %p106 = scmp.ne.s32.totalorder %s92, %s93
      %p107 = scmp.eq.s32.totalorder %s21, 1
      %p108 = por %p106, %p107
      %p110 = scmp.ne.s32.totalorder %s93, %s109
      %p111 = scmp.eq.s32.totalorder %s21, 0
      %p112 = por %p110, %p111
      %s113 = ssub.s32 %s23, %s30
      %p114 = scmp.eq.s32.totalorder %s113, 0
      %s116 = sadd.s32 %s115, 1
      %s117 = scalar_select %p114, %s115, %s116
      %p120 = pneg %p114
      %p121 = scmp.eq.s32.totalorder %s15, 1
      %p122 = por %p120, %p121
      %p123 = scmp.ne.s32.totalorder %s115, %s118
      %p124 = scmp.eq.s32.totalorder %s15, 0
      %p125 = por %p123, %p124
      %p126 = scmp.ne.s32.totalorder %s115, %s118
      %p127 = scmp.eq.s32.totalorder %s20, 1
      %p128 = por %p126, %p127
      %p129 = scmp.ne.s32.totalorder %s118, %s119
      %p130 = scmp.eq.s32.totalorder %s20, 0
      %p131 = por %p129, %p130
      %p132 = scmp.ne.s32.totalorder %s118, %s119
      %p133 = scmp.eq.s32.totalorder %s21, 1
      %p134 = por %p132, %p133
      %p136 = scmp.ne.s32.totalorder %s119, %s135
      %p137 = scmp.eq.s32.totalorder %s21, 0
      %p138 = por %p136, %p137
      %s139 = ssub.s32 %s23, %s30
      %p140 = scmp.eq.s32.totalorder %s139, 0
      %s142 = sadd.s32 %s141, 1
      %s143 = scalar_select %p140, %s141, %s142
      %p146 = pneg %p140
      %p147 = scmp.eq.s32.totalorder %s15, 1
      %p148 = por %p146, %p147
      %p149 = scmp.ne.s32.totalorder %s141, %s144
      %p150 = scmp.eq.s32.totalorder %s15, 0
      %p151 = por %p149, %p150
      %p152 = scmp.ne.s32.totalorder %s141, %s144
      %p153 = scmp.eq.s32.totalorder %s20, 1
      %p154 = por %p152, %p153
      %p155 = scmp.ne.s32.totalorder %s144, %s145
      %p156 = scmp.eq.s32.totalorder %s20, 0
      %p157 = por %p155, %p156
      %p158 = scmp.ne.s32.totalorder %s144, %s145
      %p159 = scmp.eq.s32.totalorder %s21, 1
      %p160 = por %p158, %p159
      %p162 = scmp.ne.s32.totalorder %s145, %s161
      %p163 = scmp.eq.s32.totalorder %s21, 0
      %p164 = por %p162, %p163
      %s165 = ssub.s32 %s23, %s30
      %p166 = scmp.eq.s32.totalorder %s165, 0
      %s168 = sadd.s32 %s167, 1
      %s169 = scalar_select %p166, %s167, %s168
      %p172 = pneg %p166
      %p173 = scmp.eq.s32.totalorder %s15, 1
      %p174 = por %p172, %p173
      %p175 = scmp.ne.s32.totalorder %s167, %s170
      %p176 = scmp.eq.s32.totalorder %s15, 0
      %p177 = por %p175, %p176
      %p178 = scmp.ne.s32.totalorder %s167, %s170
      %p179 = scmp.eq.s32.totalorder %s20, 1
      %p180 = por %p178, %p179
      %p181 = scmp.ne.s32.totalorder %s170, %s171
      %p182 = scmp.eq.s32.totalorder %s20, 0
      %p183 = por %p181, %p182
      %p184 = scmp.ne.s32.totalorder %s170, %s171
      %p185 = scmp.eq.s32.totalorder %s21, 1
      %p186 = por %p184, %p185
      %p188 = scmp.ne.s32.totalorder %s171, %s187
      %p189 = scmp.eq.s32.totalorder %s21, 0
      %p190 = por %p188, %p189
      %s191 = ssub.s32 %s23, %s30
      %p192 = scmp.eq.s32.totalorder %s191, 0
      %s194 = sadd.s32 %s193, 1
      %s195 = scalar_select %p192, %s193, %s194
      %p198 = pneg %p192
      %p199 = scmp.eq.s32.totalorder %s15, 1
      %p200 = por %p198, %p199
      %p201 = scmp.ne.s32.totalorder %s193, %s196
      %p202 = scmp.eq.s32.totalorder %s15, 0
      %p203 = por %p201, %p202
      %p204 = scmp.ne.s32.totalorder %s193, %s196
      %p205 = scmp.eq.s32.totalorder %s20, 1
      %p206 = por %p204, %p205
      %p207 = scmp.ne.s32.totalorder %s196, %s197
      %p208 = scmp.eq.s32.totalorder %s20, 0
      %p209 = por %p207, %p208
      %p210 = scmp.ne.s32.totalorder %s196, %s197
      %p211 = scmp.eq.s32.totalorder %s21, 1
      %p212 = por %p210, %p211
      %p214 = scmp.ne.s32.totalorder %s197, %s213
      %p215 = scmp.eq.s32.totalorder %s21, 0
      %p216 = por %p214, %p215
      %s217 = ssub.s32 %s23, %s30
      %p218 = scmp.eq.s32.totalorder %s217, 0
      %s220 = sadd.s32 %s219, 1
      %s221 = scalar_select %p218, %s219, %s220
      %p224 = pneg %p218
      %p225 = scmp.eq.s32.totalorder %s15, 1
      %p226 = por %p224, %p225
      %p227 = scmp.ne.s32.totalorder %s219, %s222
      %p228 = scmp.eq.s32.totalorder %s15, 0
      %p229 = por %p227, %p228
      %p230 = scmp.ne.s32.totalorder %s219, %s222
      %p231 = scmp.eq.s32.totalorder %s20, 1
      %p232 = por %p230, %p231
      %p233 = scmp.ne.s32.totalorder %s222, %s223
      %p234 = scmp.eq.s32.totalorder %s20, 0
      %p235 = por %p233, %p234
      %p236 = scmp.ne.s32.totalorder %s222, %s223
      %p237 = scmp.eq.s32.totalorder %s21, 1
      %p238 = por %p236, %p237
      %p240 = scmp.ne.s32.totalorder %s223, %s239
      %p241 = scmp.eq.s32.totalorder %s21, 0
      %p242 = por %p240, %p241
      %s243 = ssub.s32 %s22, %s34
      %p244 = scmp.eq.s32.totalorder %s243, 0
      %s246 = sadd.s32 %s245, 1
      %s247 = scalar_select %p244, %s245, %s246
      %p250 = pneg %p244
      %p251 = scmp.eq.s32.totalorder %s15, 1
      %p252 = por %p250, %p251
      %p253 = scmp.ne.s32.totalorder %s245, %s248
      %p254 = scmp.eq.s32.totalorder %s15, 0
      %p255 = por %p253, %p254
      %p256 = scmp.ne.s32.totalorder %s245, %s248
      %p257 = scmp.eq.s32.totalorder %s20, 1
      %p258 = por %p256, %p257
      %p259 = scmp.ne.s32.totalorder %s248, %s249
      %p260 = scmp.eq.s32.totalorder %s20, 0
      %p261 = por %p259, %p260
      %p262 = scmp.ne.s32.totalorder %s248, %s249
      %p263 = scmp.eq.s32.totalorder %s21, 1
      %p264 = por %p262, %p263
      %p266 = scmp.ne.s32.totalorder %s249, %s265
      %p267 = scmp.eq.s32.totalorder %s21, 0
      %p268 = por %p266, %p267
      %p269 = scmp.le.s32.totalorder 1, %s15
      %p270 = scmp.lt.s32.totalorder %s15, 3
      %p271 = pnand %p269, %p270
      %p272 = pneg %p271
      // Predicated region
      $region9: #{tpu_custom_call.1} parent=5 // pred_check
        _
      $region10: #{tpu_custom_call.1} parent=5 // pred_check_branch
        %274 = sbr.rel (%p271) target = $region12
      $region11: #{tpu_custom_call.1} parent=5 // pred_region
        %s275 = ssub.s32 %s15, 1
        // Predicated region
        $region13: #{tpu_custom_call.1} parent=11 // pred_check
          %p276 = pneg %p53
        $region14: #{tpu_custom_call.1} parent=11 // pred_check_branch
          %278 = sbr.rel (%p276) target = $region16
        $region15: #{tpu_custom_call.1} parent=11 // pred_region
          %s279 = smul.u32 2, %s24
          %p280 = scmp.lt.s32.totalorder %s279, 1
          %s281 = scalar_select %p280, %s279, 1
          %s282 = smul.addr %s281, 8
          %s283 = scalar_lea.vmem %s0, %s282
          %s284 = smul.u32 2, %s24
        $region16: #{tpu_custom_call.1} parent=11 // pred_fallthru
          _
      $region12: #{tpu_custom_call.1} parent=5 // pred_fallthru
        _
      %p285 = scmp.lt.s32.totalorder %s15, 2
      // Predicated region
      $region17: #{tpu_custom_call.1} parent=5 // pred_check
        %p286 = pneg %p285
      $region18: #{tpu_custom_call.1} parent=5 // pred_check_branch
        %288 = sbr.rel (%p286) target = $region20
      $region19: #{tpu_custom_call.1} parent=5 // pred_region
        // Predicated region
        $region21: #{tpu_custom_call.1} parent=19 // pred_check
          %p289 = pneg %p73
        $region22: #{tpu_custom_call.1} parent=19 // pred_check_branch
          %291 = sbr.rel (%p289) target = $region24
        $region23: #{tpu_custom_call.1} parent=19 // pred_region
          %p292 = scmp.lt.s32.totalorder %s23, 1
          %s293 = scalar_select %p292, %s23, 1
          %s294 = smul.addr %s293, 12
          %s295 = smul.addr %s294, 4
          %s296 = scalar_lea.vmem %s1, %s295
        $region24: #{tpu_custom_call.1} parent=19 // pred_fallthru
          _
        // Predicated region
        $region25: #{tpu_custom_call.1} parent=19 // pred_check
          %p297 = pneg %p99
        $region26: #{tpu_custom_call.1} parent=19 // pred_check_branch
          %299 = sbr.rel (%p297) target = $region28
        $region27: #{tpu_custom_call.1} parent=19 // pred_region
          %p300 = scmp.lt.s32.totalorder %s23, 1
          %s301 = scalar_select %p300, %s23, 1
          %s302 = smul.addr %s301, 4
          %s303 = smul.addr %s302, 4
          %s304 = scalar_lea.vmem %s2, %s303
        $region28: #{tpu_custom_call.1} parent=19 // pred_fallthru
          _
        // Predicated region
        $region29: #{tpu_custom_call.1} parent=19 // pred_check
          %p305 = pneg %p125
        $region30: #{tpu_custom_call.1} parent=19 // pred_check_branch
          %307 = sbr.rel (%p305) target = $region32
        $region31: #{tpu_custom_call.1} parent=19 // pred_region
          %p308 = scmp.lt.s32.totalorder %s23, 1
          %s309 = scalar_select %p308, %s23, 1
          %s310 = smul.addr %s309, 8
          %s311 = smul.addr %s310, 4
          %s312 = scalar_lea.vmem %s3, %s311
        $region32: #{tpu_custom_call.1} parent=19 // pred_fallthru
          _
        // Predicated region
        $region33: #{tpu_custom_call.1} parent=19 // pred_check
          %p313 = pneg %p151
        $region34: #{tpu_custom_call.1} parent=19 // pred_check_branch
          %315 = sbr.rel (%p313) target = $region36
        $region35: #{tpu_custom_call.1} parent=19 // pred_region
          %p316 = scmp.lt.s32.totalorder %s23, 1
          %s317 = scalar_select %p316, %s23, 1
          %s318 = smul.addr %s317, 4
          %s319 = smul.addr %s318, 4
          %s320 = scalar_lea.vmem %s4, %s319
        $region36: #{tpu_custom_call.1} parent=19 // pred_fallthru
          _
        // Predicated region
        $region37: #{tpu_custom_call.1} parent=19 // pred_check
          %p321 = pneg %p177
        $region38: #{tpu_custom_call.1} parent=19 // pred_check_branch
          %323 = sbr.rel (%p321) target = $region40
        $region39: #{tpu_custom_call.1} parent=19 // pred_region
          %p324 = scmp.lt.s32.totalorder %s23, 1
          %s325 = scalar_select %p324, %s23, 1
          %s326 = scalar_lea.vmem %s5, %s325
        $region40: #{tpu_custom_call.1} parent=19 // pred_fallthru
          _
        // Predicated region
        $region41: #{tpu_custom_call.1} parent=19 // pred_check
          %p327 = pneg %p203
        $region42: #{tpu_custom_call.1} parent=19 // pred_check_branch
          %329 = sbr.rel (%p327) target = $region44
        $region43: #{tpu_custom_call.1} parent=19 // pred_region
          %p330 = scmp.lt.s32.totalorder %s23, 1
          %s331 = scalar_select %p330, %s23, 1
          %s332 = scalar_lea.vmem %s6, %s331
        $region44: #{tpu_custom_call.1} parent=19 // pred_fallthru
          _
        // Predicated region
        $region45: #{tpu_custom_call.1} parent=19 // pred_check
          %p333 = pneg %p229
        $region46: #{tpu_custom_call.1} parent=19 // pred_check_branch
          %335 = sbr.rel (%p333) target = $region48
        $region47: #{tpu_custom_call.1} parent=19 // pred_region
          %p336 = scmp.lt.s32.totalorder %s23, 1
          %s337 = scalar_select %p336, %s23, 1
          %s338 = smul.addr %s337, 8
          %s339 = scalar_lea.vmem %s7, %s338
        $region48: #{tpu_custom_call.1} parent=19 // pred_fallthru
          _
      $region20: #{tpu_custom_call.1} parent=5 // pred_fallthru
        _
      %p340 = scmp.le.s32.totalorder 1, %s15
      %p341 = scmp.lt.s32.totalorder %s15, 3
      %p342 = pnand %p340, %p341
      %p343 = pneg %p342
      // Predicated region
      $region49: #{tpu_custom_call.1} parent=5 // pred_check
        _
      $region50: #{tpu_custom_call.1} parent=5 // pred_check_branch
        %345 = sbr.rel (%p342) target = $region52
      $region51: #{tpu_custom_call.1} parent=5 // pred_region
        %s346 = ssub.s32 %s15, 1
        %s347 = smul.u32 2, %s24
        %p348 = scmp.lt.s32.totalorder %s347, 1
        %s349 = scalar_select %p348, %s347, 1
        %s350 = smul.addr %s349, 8
        %s351 = scalar_lea.vmem %s0, %s350
        %p352 = pneg %p53
        %p353 = pneg %p50
        %p354 = scmp.lt.s32.totalorder %s25, 1
        %s355 = scalar_select %p354, %s25, 1
        %s356 = smul.addr %s355, 12
        %s357 = smul.addr %s356, 4
        %s358 = scalar_lea.vmem %s1, %s357
        %p359 = pneg %p79
        %p360 = pneg %p76
        %p361 = scmp.lt.s32.totalorder %s25, 1
        %s362 = scalar_select %p361, %s25, 1
        %s363 = smul.addr %s362, 4
        %s364 = smul.addr %s363, 4
        %s365 = scalar_lea.vmem %s2, %s364
        %p366 = pneg %p105
        %p367 = pneg %p102
        %p368 = scmp.lt.s32.totalorder %s25, 1
        %s369 = scalar_select %p368, %s25, 1
        %s370 = smul.addr %s369, 8
        %s371 = smul.addr %s370, 4
        %s372 = scalar_lea.vmem %s3, %s371
        %p373 = pneg %p131
        %p374 = pneg %p128
        %p375 = scmp.lt.s32.totalorder %s25, 1
        %s376 = scalar_select %p375, %s25, 1
        %s377 = smul.addr %s376, 4
        %s378 = smul.addr %s377, 4
        %s379 = scalar_lea.vmem %s4, %s378
        %p380 = pneg %p157
        %p381 = pneg %p154
        %p382 = scmp.lt.s32.totalorder %s25, 1
        %s383 = scalar_select %p382, %s25, 1
        %s384 = scalar_lea.vmem %s5, %s383
        %p385 = pneg %p183
        %p386 = pneg %p180
        %p387 = scmp.lt.s32.totalorder %s25, 1
        %s388 = scalar_select %p387, %s25, 1
        %s389 = scalar_lea.vmem %s6, %s388
        %p390 = pneg %p209
        %p391 = pneg %p206
        %p392 = scmp.lt.s32.totalorder %s25, 1
        %s393 = scalar_select %p392, %s25, 1
        %s394 = smul.addr %s393, 8
        %s395 = scalar_lea.vmem %s7, %s394
        %p396 = pneg %p235
        %p397 = pneg %p232
        %p398 = pneg %p261
        %p399 = pneg %p258
        %s400 = smul.u32 2, %s24
        %p401 = scmp.lt.s32.totalorder %s400, 1
        %s402 = scalar_select %p401, %s400, 1
        %s403 = smul.addr %s402, 8
        %s404 = scalar_lea.vmem %s0, %s403
        %s405 = smul.u32 2, %s24
        %p406 = scmp.lt.s32.totalorder %s25, 1
        %s407 = scalar_select %p406, %s25, 1
        %s408 = smul.addr %s407, 12
        %s409 = smul.addr %s408, 4
        %s410 = scalar_lea.vmem %s1, %s409
        %p411 = scmp.lt.s32.totalorder %s25, 1
        %s412 = scalar_select %p411, %s25, 1
        %s413 = smul.addr %s412, 4
        %s414 = smul.addr %s413, 4
        %s415 = scalar_lea.vmem %s2, %s414
        %p416 = scmp.lt.s32.totalorder %s25, 1
        %s417 = scalar_select %p416, %s25, 1
        %s418 = smul.addr %s417, 8
        %s419 = smul.addr %s418, 4
        %s420 = scalar_lea.vmem %s3, %s419
        %p421 = scmp.lt.s32.totalorder %s25, 1
        %s422 = scalar_select %p421, %s25, 1
        %s423 = smul.addr %s422, 4
        %s424 = smul.addr %s423, 4
        %s425 = scalar_lea.vmem %s4, %s424
        %p426 = scmp.lt.s32.totalorder %s25, 1
        %s427 = scalar_select %p426, %s25, 1
        %s428 = scalar_lea.vmem %s5, %s427
        %p429 = scmp.lt.s32.totalorder %s25, 1
        %s430 = scalar_select %p429, %s25, 1
        %s431 = scalar_lea.vmem %s6, %s430
        %p432 = scmp.lt.s32.totalorder %s25, 1
        %s433 = scalar_select %p432, %s25, 1
        %s434 = smul.addr %s433, 8
        %s435 = scalar_lea.vmem %s7, %s434
        %s436 = smul.u32 2, %s24
        %p438 = scmp.eq.s32.totalorder %s25, 0
        // Predicated region
        $region53: #{tpu_custom_call.1} parent=51 // pred_check
          %p439 = pneg %p438
        $region54: #{tpu_custom_call.1} parent=51 // pred_check_branch
          %441 = sbr.rel (%p439) target = $region56
        $region55: #{tpu_custom_call.1} parent=51 // pred_region
          %v442 = vld [vmem:[%s404] sm:$0xff]
          %v443 = vld [vmem:[%s404 + $0x8] sm:$0xff]
          %vm444 = vcmask 261120
          %445 = vst.msk [vmem:[#allocation2] sm:$0xff] %vm444, %v442
          %446 = vst.msk [vmem:[#allocation2 + $0x8] sm:$0xff] %vm444, %v443
        $region56: #{tpu_custom_call.1} parent=51 // pred_fallthru
          _
        %v447 = vld [vmem:[#allocation2] sm:$0xff]
        %v448 = vld [vmem:[#allocation2 + $0x8] sm:$0xff]
        %v449 = vld [vmem:[%s435] sm:$0x3f]
        %vm450 = vcmask 261120
        %v451 = vsel %vm450, %v447, 0.0
        %452 = vadd.xlane.f32.xlu0 %v451
        %v453 = vpop.xlane.xlu0 %452
        %v454 = vsel %vm450, %v448, 0.0
        %455 = vadd.xlane.f32.xlu0 %v454
        %v456 = vpop.xlane.xlu0 %455
        %v457 = vrcp.pop 32.0
        %v458 = vmul.f32 %v453, %v457
        %v459 = vmul.f32 %v456, %v457
        %v460 = vsub.f32 %v447, %v458
        %v461 = vsub.f32 %v448, %v459
        %v462 = vmul.f32 %v460, %v460
        %v463 = vmul.f32 %v461, %v461
        %v464 = vsel %vm450, %v462, 0.0
        %465 = vadd.xlane.f32.xlu0 %v464
        %v466 = vpop.xlane.xlu0 %465
        %v467 = vsel %vm450, %v463, 0.0
        %468 = vadd.xlane.f32.xlu0 %v467
        %v469 = vpop.xlane.xlu0 %468
        %v470 = vmul.f32 %v466, %v457
        %v471 = vmul.f32 %v469, %v457
        %v472 = vadd.f32 %v470, 1e-05
        %v473 = vadd.f32 %v471, 1e-05
        %v474 = vrsqrt.pop %v472
        %v475 = vrsqrt.pop %v473
        %v476 = vmul.f32 %v460, %v474
        %v477 = vmul.f32 %v461, %v475
        %v478 = vlaneseq
        %v479 = vshrl.u32 %v478, 7
        %v480 = vsub.s32 0, %v479
        %v481 = vrot.slane %v449, %v480
        %v482 = vmul.f32 %v476, %v481
        %v483 = vmul.f32 %v477, %v481
        %v484 = vlaneseq
        %v485 = vshrl.u32 %v484, 7
        %v486 = vsub.s32 1, %v485
        %v487 = vrot.slane %v449, %v486
        %v488 = vadd.f32 %v482, %v487
        %v489 = vadd.f32 %v483, %v487
        %v490 = vpack.c.bf16 %v489, %v488
        %v491 = vld [vmem:[%s410] sm:$0xf]
        %v492 = vld [vmem:[%s410 + $0x4] sm:$0xf]
        %v493 = vld [vmem:[%s410 + $0x8] sm:$0xf]
        %v494 = vld [vmem:[%s410 + $0xc] sm:$0xf]
        %v495 = vld [vmem:[%s410 + $0x10] sm:$0xf]
        %v496 = vld [vmem:[%s410 + $0x14] sm:$0xf]
        %v497 = vld [vmem:[%s410 + $0x18] sm:$0xf]
        %v498 = vld [vmem:[%s410 + $0x1c] sm:$0xf]
        %v499 = vld [vmem:[%s410 + $0x20] sm:$0xf]
        %v500 = vld [vmem:[%s410 + $0x24] sm:$0xf]
        %v501 = vld [vmem:[%s410 + $0x28] sm:$0xf]
        %v502 = vld [vmem:[%s410 + $0x2c] sm:$0xf]
        %v503 = vld [vmem:[%s428] sm:$0x1]
        %v505 = vlaneseq
        %v506 = vshrl.u32 %v505, 7
        %v507 = vsub.s32 0, %v506
        %v508 = vrot.slane %v503, %v507
        %v522 = vunpack.c.l.b16 %v491
        %v523 = vunpack.c.l.b16 %v492
        %v524 = vunpack.c.l.b16 %v493
        %v525 = vunpack.c.l.b16 %v494
        %v526 = vunpack.c.l.b16 %v495
        %v527 = vunpack.c.l.b16 %v496
        %v528 = vunpack.c.l.b16 %v497
        %v529 = vunpack.c.l.b16 %v498
        %v530 = vunpack.c.l.b16 %v499
        %v531 = vunpack.c.l.b16 %v500
        %v532 = vunpack.c.l.b16 %v501
        %v533 = vunpack.c.l.b16 %v502
        %v534 = vpack.c.b16 %v523, %v522
        %v535 = vpack.c.b16 %v525, %v524
        %v536 = vpack.c.b16 %v527, %v526
        %v537 = vpack.c.b16 %v529, %v528
        %v538 = vpack.c.b16 %v531, %v530
        %v539 = vpack.c.b16 %v533, %v532
        %v541 = vsel %vm450, %v490, 0
        %v544 = vsel %vm450, %v534, 0
        %v547 = vsel %vm450, %v535, 0
        %v550 = vsel %vm450, %v536, 0
        %v553 = vsel %vm450, %v537, 0
        %v556 = vsel %vm450, %v538, 0
        %v559 = vsel %vm450, %v539, 0
        %561 = vmatprep.subr.bf16.mxu0 0
        %562 = vmatpush1.bf16.xpose.msra.mxu0 0
        %563 = vmatprep.subr.bf16.mxu0 0
        %564 = vmatpush1.bf16.xpose.msra.mxu0 0
        %565 = vmatprep.subr.bf16.mxu0 0
        %566 = vmatpush1.bf16.xpose.msra.mxu0 %v559
        %567 = vmatprep.subr.bf16.mxu0 0
        %568 = vmatpush1.bf16.xpose.msra.mxu0 %v556
        %569 = vmatprep.subr.bf16.mxu0 0
        %570 = vmatpush1.bf16.xpose.msra.mxu0 %v553
        %571 = vmatprep.subr.bf16.mxu0 0
        %572 = vmatpush1.bf16.xpose.msra.mxu0 %v550
        %573 = vmatprep.subr.bf16.mxu0 0
        %574 = vmatpush1.bf16.xpose.msra.mxu0 %v547
        %575 = vmatprep.subr.bf16.mxu0 0
        %576 = vmatpush1.bf16.xpose.msra.mxu0 %v544
        %577 = vmatprep.subr.bf16.mxu0 0
        %578 = vmatpush2.bf16.xpose.msra.mxu0 0
        %579 = vmatprep.subr.bf16.mxu0 0
        %580 = vmatpush2.bf16.xpose.msra.mxu0 0
        %581 = vmatprep.subr.bf16.mxu0 0
        %582 = vmatpush2.bf16.xpose.msra.mxu0 0
        %583 = vmatprep.subr.bf16.mxu0 0
        %584 = vmatpush2.bf16.xpose.msra.mxu0 0
        %585 = vmatprep.subr.bf16.mxu0 0
        %586 = vmatpush2.bf16.xpose.msra.mxu0 0
        %587 = vmatprep.subr.bf16.mxu0 0
        %588 = vmatpush2.bf16.xpose.msra.mxu0 0
        %589 = vmatprep.subr.bf16.mxu0 0
        %590 = vmatpush2.bf16.xpose.msra.mxu0 0
        %591 = vmatprep.subr.bf16.mxu0 0
        %592 = vmatpush2.bf16.xpose.msra.mxu0 0
        %593 = vmatprep.mubr.bf16.mxu0 0
        %594 = vmatmul.mubr.bf16.gmra.mxu0 %v541
        %v595 = vpop.f32.mrf.mxu0
        %v596 = vadd.f32 %v508, %v595
        %v597 = vpop.f32.mrf.mxu0
        %v598 = vpop.f32.mrf.mxu0
        %v599 = vadd.f32 %v508, %v598
        %v600 = vpop.f32.mrf.mxu0
        %601 = vdwg.mxu0
        %v602 = vld [vmem:[%s415] sm:$0xf]
        %v603 = vld [vmem:[%s415 + $0x4] sm:$0xf]
        %v604 = vld [vmem:[%s415 + $0x8] sm:$0xf]
        %v605 = vld [vmem:[%s415 + $0xc] sm:$0xf]
        %608 = vrot.lane.b32.xlu0 %v596, 120
        %v609 = vpop.permute.xlu0 %608
        %610 = vrot.lane.b32.xlu0 %v599, 120
        %v611 = vpop.permute.xlu0 %610
        %614 = vrot.lane.b32.xlu0 %v596, 112
        %v615 = vpop.permute.xlu0 %614
        %616 = vrot.lane.b32.xlu0 %v599, 112
        %v617 = vpop.permute.xlu0 %616
        %620 = vrot.lane.b32.xlu0 %v596, 104
        %v621 = vpop.permute.xlu0 %620
        %622 = vrot.lane.b32.xlu0 %v599, 104
        %v623 = vpop.permute.xlu0 %622
        %v626 = vcombine.low %v596, %v615
        %v627 = vcombine.high %v596, %v615
        %v629 = vunpack.c.l.s4 1983009808
        %v630 = vunpack.c.0.s8 %v629
        %v631 = vlaneseq
        %v632 = vshrl.u32 %v631, 7
        %v633 = vsub.s32 %v630, %v632
        %v634 = vrot.slane %v626, %v633
        %v636 = vunpack.c.l.s4 1983009808
        %v637 = vunpack.c.0.s8 %v636
        %v638 = vlaneseq
        %v639 = vshrl.u32 %v638, 7
        %v640 = vsub.s32 %v637, %v639
        %v641 = vrot.slane %v627, %v640
        %v642 = vcombine.low %v609, %v621
        %v643 = vcombine.high %v609, %v621
        %v645 = vunpack.c.l.s4 1983009808
        %v646 = vunpack.c.0.s8 %v645
        %v647 = vlaneseq
        %v648 = vshrl.u32 %v647, 7
        %v649 = vsub.s32 %v646, %v648
        %v650 = vrot.slane %v642, %v649
        %v652 = vunpack.c.l.s4 1983009808
        %v653 = vunpack.c.0.s8 %v652
        %v654 = vlaneseq
        %v655 = vshrl.u32 %v654, 7
        %v656 = vsub.s32 %v653, %v655
        %v657 = vrot.slane %v643, %v656
        %v658 = vcombine.low %v634, %v650
        %v659 = vcombine.high %v634, %v650
        %v661 = vunpack.c.l.s4 1934713408
        %v662 = vunpack.c.0.s8 %v661
        %v663 = vlaneseq
        %v664 = vshrl.u32 %v663, 7
        %v665 = vsub.s32 %v662, %v664
        %v666 = vrot.slane %v658, %v665
        %v668 = vunpack.c.l.s4 1934713408
        %v669 = vunpack.c.0.s8 %v668
        %v670 = vlaneseq
        %v671 = vshrl.u32 %v670, 7
        %v672 = vsub.s32 %v669, %v671
        %v673 = vrot.slane %v659, %v672
        %v674 = vcombine.low %v641, %v657
        %v675 = vcombine.high %v641, %v657
        %v677 = vunpack.c.l.s4 1934713408
        %v678 = vunpack.c.0.s8 %v677
        %v679 = vlaneseq
        %v680 = vshrl.u32 %v679, 7
        %v681 = vsub.s32 %v678, %v680
        %v682 = vrot.slane %v674, %v681
        %v684 = vunpack.c.l.s4 1934713408
        %v685 = vunpack.c.0.s8 %v684
        %v686 = vlaneseq
        %v687 = vshrl.u32 %v686, 7
        %v688 = vsub.s32 %v685, %v687
        %v689 = vrot.slane %v675, %v688
        %v690 = vcombine.high %v666, 0.0
        %v691 = vcombine.high %v673, 0.0
        %v692 = vcombine.high %v682, 0.0
        %v693 = vcombine.high %v689, 0.0
        %v694 = vcombine.low %v599, %v617
        %v695 = vcombine.high %v599, %v617
        %v697 = vunpack.c.l.s4 1983009808
        %v698 = vunpack.c.0.s8 %v697
        %v699 = vlaneseq
        %v700 = vshrl.u32 %v699, 7
        %v701 = vsub.s32 %v698, %v700
        %v702 = vrot.slane %v694, %v701
        %v704 = vunpack.c.l.s4 1983009808
        %v705 = vunpack.c.0.s8 %v704
        %v706 = vlaneseq
        %v707 = vshrl.u32 %v706, 7
        %v708 = vsub.s32 %v705, %v707
        %v709 = vrot.slane %v695, %v708
        %v710 = vcombine.low %v611, %v623
        %v711 = vcombine.high %v611, %v623
        %v713 = vunpack.c.l.s4 1983009808
        %v714 = vunpack.c.0.s8 %v713
        %v715 = vlaneseq
        %v716 = vshrl.u32 %v715, 7
        %v717 = vsub.s32 %v714, %v716
        %v718 = vrot.slane %v710, %v717
        %v720 = vunpack.c.l.s4 1983009808
        %v721 = vunpack.c.0.s8 %v720
        %v722 = vlaneseq
        %v723 = vshrl.u32 %v722, 7
        %v724 = vsub.s32 %v721, %v723
        %v725 = vrot.slane %v711, %v724
        %v726 = vcombine.low %v702, %v718
        %v727 = vcombine.high %v702, %v718
        %v729 = vunpack.c.l.s4 1934713408
        %v730 = vunpack.c.0.s8 %v729
        %v731 = vlaneseq
        %v732 = vshrl.u32 %v731, 7
        %v733 = vsub.s32 %v730, %v732
        %v734 = vrot.slane %v726, %v733
        %v736 = vunpack.c.l.s4 1934713408
        %v737 = vunpack.c.0.s8 %v736
        %v738 = vlaneseq
        %v739 = vshrl.u32 %v738, 7
        %v740 = vsub.s32 %v737, %v739
        %v741 = vrot.slane %v727, %v740
        %v742 = vcombine.low %v709, %v725
        %v743 = vcombine.high %v709, %v725
        %v745 = vunpack.c.l.s4 1934713408
        %v746 = vunpack.c.0.s8 %v745
        %v747 = vlaneseq
        %v748 = vshrl.u32 %v747, 7
        %v749 = vsub.s32 %v746, %v748
        %v750 = vrot.slane %v742, %v749
        %v752 = vunpack.c.l.s4 1934713408
        %v753 = vunpack.c.0.s8 %v752
        %v754 = vlaneseq
        %v755 = vshrl.u32 %v754, 7
        %v756 = vsub.s32 %v753, %v755
        %v757 = vrot.slane %v743, %v756
        %v758 = vcombine.high %v734, 0.0
        %v759 = vcombine.high %v741, 0.0
        %v760 = vcombine.high %v750, 0.0
        %v761 = vcombine.high %v757, 0.0
        %v762 = vcombine.low %v666, %v673
        %v764 = vunpack.c.l.s4 1983009808
        %v765 = vunpack.c.0.s8 %v764
        %v766 = vlaneseq
        %v767 = vshrl.u32 %v766, 7
        %v768 = vsub.s32 %v765, %v767
        %v769 = vrot.slane %v762, %v768
        %v770 = vcombine.low %v690, %v691
        %v772 = vunpack.c.l.s4 1983009808
        %v773 = vunpack.c.0.s8 %v772
        %v774 = vlaneseq
        %v775 = vshrl.u32 %v774, 7
        %v776 = vsub.s32 %v773, %v775
        %v777 = vrot.slane %v770, %v776
        %v778 = vcombine.low %v682, %v689
        %v780 = vunpack.c.l.s4 1983009808
        %v781 = vunpack.c.0.s8 %v780
        %v782 = vlaneseq
        %v783 = vshrl.u32 %v782, 7
        %v784 = vsub.s32 %v781, %v783
        %v785 = vrot.slane %v778, %v784
        %v786 = vcombine.low %v692, %v693
        %v788 = vunpack.c.l.s4 1983009808
        %v789 = vunpack.c.0.s8 %v788
        %v790 = vlaneseq
        %v791 = vshrl.u32 %v790, 7
        %v792 = vsub.s32 %v789, %v791
        %v793 = vrot.slane %v786, %v792
        %v794 = vcombine.low %v769, %v777
        %v795 = vcombine.high %v769, %v777
        %v797 = vunpack.c.l.s4 1934713408
        %v798 = vunpack.c.0.s8 %v797
        %v799 = vlaneseq
        %v800 = vshrl.u32 %v799, 7
        %v801 = vsub.s32 %v798, %v800
        %v802 = vrot.slane %v794, %v801
        %v804 = vunpack.c.l.s4 1934713408
        %v805 = vunpack.c.0.s8 %v804
        %v806 = vlaneseq
        %v807 = vshrl.u32 %v806, 7
        %v808 = vsub.s32 %v805, %v807
        %v809 = vrot.slane %v795, %v808
        %v810 = vcombine.low %v785, %v793
        %v811 = vcombine.high %v785, %v793
        %v813 = vunpack.c.l.s4 1934713408
        %v814 = vunpack.c.0.s8 %v813
        %v815 = vlaneseq
        %v816 = vshrl.u32 %v815, 7
        %v817 = vsub.s32 %v814, %v816
        %v818 = vrot.slane %v810, %v817
        %v820 = vunpack.c.l.s4 1934713408
        %v821 = vunpack.c.0.s8 %v820
        %v822 = vlaneseq
        %v823 = vshrl.u32 %v822, 7
        %v824 = vsub.s32 %v821, %v823
        %v825 = vrot.slane %v811, %v824
        %v826 = vcombine.low %v802, %v818
        %v827 = vcombine.high %v802, %v818
        %v828 = vcombine.low %v809, %v825
        %v829 = vcombine.high %v809, %v825
        %v830 = vcombine.low %v734, %v741
        %v832 = vunpack.c.l.s4 1983009808
        %v833 = vunpack.c.0.s8 %v832
        %v834 = vlaneseq
        %v835 = vshrl.u32 %v834, 7
        %v836 = vsub.s32 %v833, %v835
        %v837 = vrot.slane %v830, %v836
        %v838 = vcombine.low %v758, %v759
        %v840 = vunpack.c.l.s4 1983009808
        %v841 = vunpack.c.0.s8 %v840
        %v842 = vlaneseq
        %v843 = vshrl.u32 %v842, 7
        %v844 = vsub.s32 %v841, %v843
        %v845 = vrot.slane %v838, %v844
        %v846 = vcombine.low %v750, %v757
        %v848 = vunpack.c.l.s4 1983009808
        %v849 = vunpack.c.0.s8 %v848
        %v850 = vlaneseq
        %v851 = vshrl.u32 %v850, 7
        %v852 = vsub.s32 %v849, %v851
        %v853 = vrot.slane %v846, %v852
        %v854 = vcombine.low %v760, %v761
        %v856 = vunpack.c.l.s4 1983009808
        %v857 = vunpack.c.0.s8 %v856
        %v858 = vlaneseq
        %v859 = vshrl.u32 %v858, 7
        %v860 = vsub.s32 %v857, %v859
        %v861 = vrot.slane %v854, %v860
        %v862 = vcombine.low %v837, %v845
        %v863 = vcombine.high %v837, %v845
        %v865 = vunpack.c.l.s4 1934713408
        %v866 = vunpack.c.0.s8 %v865
        %v867 = vlaneseq
        %v868 = vshrl.u32 %v867, 7
        %v869 = vsub.s32 %v866, %v868
        %v870 = vrot.slane %v862, %v869
        %v872 = vunpack.c.l.s4 1934713408
        %v873 = vunpack.c.0.s8 %v872
        %v874 = vlaneseq
        %v875 = vshrl.u32 %v874, 7
        %v876 = vsub.s32 %v873, %v875
        %v877 = vrot.slane %v863, %v876
        %v878 = vcombine.low %v853, %v861
        %v879 = vcombine.high %v853, %v861
        %v881 = vunpack.c.l.s4 1934713408
        %v882 = vunpack.c.0.s8 %v881
        %v883 = vlaneseq
        %v884 = vshrl.u32 %v883, 7
        %v885 = vsub.s32 %v882, %v884
        %v886 = vrot.slane %v878, %v885
        %v888 = vunpack.c.l.s4 1934713408
        %v889 = vunpack.c.0.s8 %v888
        %v890 = vlaneseq
        %v891 = vshrl.u32 %v890, 7
        %v892 = vsub.s32 %v889, %v891
        %v893 = vrot.slane %v879, %v892
        %v894 = vcombine.low %v870, %v886
        %v895 = vcombine.high %v870, %v886
        %v896 = vcombine.low %v877, %v893
        %v897 = vcombine.high %v877, %v893
        %v898 = vpack.c.bf16 %v826, %v826
        %v899 = vpack.c.bf16 %v827, %v827
        %v900 = vpack.c.bf16 %v828, %v828
        %v901 = vpack.c.bf16 %v829, %v829
        %v902 = vpack.c.bf16 %v894, %v894
        %v903 = vpack.c.bf16 %v895, %v895
        %v904 = vpack.c.bf16 %v896, %v896
        %v905 = vpack.c.bf16 %v897, %v897
        %906 = vrot.lane.b32.xlu0 %v596, 96
        %v907 = vpop.permute.xlu0 %906
        %908 = vrot.lane.b32.xlu0 %v599, 96
        %v909 = vpop.permute.xlu0 %908
        %910 = vrot.lane.b32.xlu0 %v609, 96
        %v911 = vpop.permute.xlu0 %910
        %912 = vrot.lane.b32.xlu0 %v611, 96
        %v913 = vpop.permute.xlu0 %912
        %914 = vrot.lane.b32.xlu0 %v615, 96
        %v915 = vpop.permute.xlu0 %914
        %916 = vrot.lane.b32.xlu0 %v617, 96
        %v917 = vpop.permute.xlu0 %916
        %918 = vrot.lane.b32.xlu0 %v621, 96
        %v919 = vpop.permute.xlu0 %918
        %920 = vrot.lane.b32.xlu0 %v623, 96
        %v921 = vpop.permute.xlu0 %920
        %v930 = vcombine.low %v907, %v915
        %v931 = vcombine.high %v907, %v915
        %v933 = vunpack.c.l.s4 1983009808
        %v934 = vunpack.c.0.s8 %v933
        %v935 = vlaneseq
        %v936 = vshrl.u32 %v935, 7
        %v937 = vsub.s32 %v934, %v936
        %v938 = vrot.slane %v930, %v937
        %v940 = vunpack.c.l.s4 1983009808
        %v941 = vunpack.c.0.s8 %v940
        %v942 = vlaneseq
        %v943 = vshrl.u32 %v942, 7
        %v944 = vsub.s32 %v941, %v943
        %v945 = vrot.slane %v931, %v944
        %v946 = vcombine.low %v911, %v919
        %v947 = vcombine.high %v911, %v919
        %v949 = vunpack.c.l.s4 1983009808
        %v950 = vunpack.c.0.s8 %v949
        %v951 = vlaneseq
        %v952 = vshrl.u32 %v951, 7
        %v953 = vsub.s32 %v950, %v952
        %v954 = vrot.slane %v946, %v953
        %v956 = vunpack.c.l.s4 1983009808
        %v957 = vunpack.c.0.s8 %v956
        %v958 = vlaneseq
        %v959 = vshrl.u32 %v958, 7
        %v960 = vsub.s32 %v957, %v959
        %v961 = vrot.slane %v947, %v960
        %v962 = vcombine.low %v938, %v954
        %v963 = vcombine.high %v938, %v954
        %v965 = vunpack.c.l.s4 1934713408
        %v966 = vunpack.c.0.s8 %v965
        %v967 = vlaneseq
        %v968 = vshrl.u32 %v967, 7
        %v969 = vsub.s32 %v966, %v968
        %v970 = vrot.slane %v962, %v969
        %v972 = vunpack.c.l.s4 1934713408
        %v973 = vunpack.c.0.s8 %v972
        %v974 = vlaneseq
        %v975 = vshrl.u32 %v974, 7
        %v976 = vsub.s32 %v973, %v975
        %v977 = vrot.slane %v963, %v976
        %v978 = vcombine.low %v945, %v961
        %v979 = vcombine.high %v945, %v961
        %v981 = vunpack.c.l.s4 1934713408
        %v982 = vunpack.c.0.s8 %v981
        %v983 = vlaneseq
        %v984 = vshrl.u32 %v983, 7
        %v985 = vsub.s32 %v982, %v984
        %v986 = vrot.slane %v978, %v985
        %v988 = vunpack.c.l.s4 1934713408
        %v989 = vunpack.c.0.s8 %v988
        %v990 = vlaneseq
        %v991 = vshrl.u32 %v990, 7
        %v992 = vsub.s32 %v989, %v991
        %v993 = vrot.slane %v979, %v992
        %v994 = vcombine.high %v970, 0.0
        %v995 = vcombine.high %v977, 0.0
        %v996 = vcombine.high %v986, 0.0
        %v997 = vcombine.high %v993, 0.0
        %v998 = vcombine.low %v909, %v917
        %v999 = vcombine.high %v909, %v917
        %v1001 = vunpack.c.l.s4 1983009808
        %v1002 = vunpack.c.0.s8 %v1001
        %v1003 = vlaneseq
        %v1004 = vshrl.u32 %v1003, 7
        %v1005 = vsub.s32 %v1002, %v1004
        %v1006 = vrot.slane %v998, %v1005
        %v1008 = vunpack.c.l.s4 1983009808
        %v1009 = vunpack.c.0.s8 %v1008
        %v1010 = vlaneseq
        %v1011 = vshrl.u32 %v1010, 7
        %v1012 = vsub.s32 %v1009, %v1011
        %v1013 = vrot.slane %v999, %v1012
        %v1014 = vcombine.low %v913, %v921
        %v1015 = vcombine.high %v913, %v921
        %v1017 = vunpack.c.l.s4 1983009808
        %v1018 = vunpack.c.0.s8 %v1017
        %v1019 = vlaneseq
        %v1020 = vshrl.u32 %v1019, 7
        %v1021 = vsub.s32 %v1018, %v1020
        %v1022 = vrot.slane %v1014, %v1021
        %v1024 = vunpack.c.l.s4 1983009808
        %v1025 = vunpack.c.0.s8 %v1024
        %v1026 = vlaneseq
        %v1027 = vshrl.u32 %v1026, 7
        %v1028 = vsub.s32 %v1025, %v1027
        %v1029 = vrot.slane %v1015, %v1028
        %v1030 = vcombine.low %v1006, %v1022
        %v1031 = vcombine.high %v1006, %v1022
        %v1033 = vunpack.c.l.s4 1934713408
        %v1034 = vunpack.c.0.s8 %v1033
        %v1035 = vlaneseq
        %v1036 = vshrl.u32 %v1035, 7
        %v1037 = vsub.s32 %v1034, %v1036
        %v1038 = vrot.slane %v1030, %v1037
        %v1040 = vunpack.c.l.s4 1934713408
        %v1041 = vunpack.c.0.s8 %v1040
        %v1042 = vlaneseq
        %v1043 = vshrl.u32 %v1042, 7
        %v1044 = vsub.s32 %v1041, %v1043
        %v1045 = vrot.slane %v1031, %v1044
        %v1046 = vcombine.low %v1013, %v1029
        %v1047 = vcombine.high %v1013, %v1029
        %v1049 = vunpack.c.l.s4 1934713408
        %v1050 = vunpack.c.0.s8 %v1049
        %v1051 = vlaneseq
        %v1052 = vshrl.u32 %v1051, 7
        %v1053 = vsub.s32 %v1050, %v1052
        %v1054 = vrot.slane %v1046, %v1053
        %v1056 = vunpack.c.l.s4 1934713408
        %v1057 = vunpack.c.0.s8 %v1056
        %v1058 = vlaneseq
        %v1059 = vshrl.u32 %v1058, 7
        %v1060 = vsub.s32 %v1057, %v1059
        %v1061 = vrot.slane %v1047, %v1060
        %v1062 = vcombine.high %v1038, 0.0
        %v1063 = vcombine.high %v1045, 0.0
        %v1064 = vcombine.high %v1054, 0.0
        %v1065 = vcombine.high %v1061, 0.0
        %v1066 = vcombine.low %v970, %v977
        %v1068 = vunpack.c.l.s4 1983009808
        %v1069 = vunpack.c.0.s8 %v1068
        %v1070 = vlaneseq
        %v1071 = vshrl.u32 %v1070, 7
        %v1072 = vsub.s32 %v1069, %v1071
        %v1073 = vrot.slane %v1066, %v1072
        %v1074 = vcombine.low %v994, %v995
        %v1076 = vunpack.c.l.s4 1983009808
        %v1077 = vunpack.c.0.s8 %v1076
        %v1078 = vlaneseq
        %v1079 = vshrl.u32 %v1078, 7
        %v1080 = vsub.s32 %v1077, %v1079
        %v1081 = vrot.slane %v1074, %v1080
        %v1082 = vcombine.low %v986, %v993
        %v1084 = vunpack.c.l.s4 1983009808
        %v1085 = vunpack.c.0.s8 %v1084
        %v1086 = vlaneseq
        %v1087 = vshrl.u32 %v1086, 7
        %v1088 = vsub.s32 %v1085, %v1087
        %v1089 = vrot.slane %v1082, %v1088
        %v1090 = vcombine.low %v996, %v997
        %v1092 = vunpack.c.l.s4 1983009808
        %v1093 = vunpack.c.0.s8 %v1092
        %v1094 = vlaneseq
        %v1095 = vshrl.u32 %v1094, 7
        %v1096 = vsub.s32 %v1093, %v1095
        %v1097 = vrot.slane %v1090, %v1096
        %v1098 = vcombine.low %v1073, %v1081
        %v1099 = vcombine.high %v1073, %v1081
        %v1101 = vunpack.c.l.s4 1934713408
        %v1102 = vunpack.c.0.s8 %v1101
        %v1103 = vlaneseq
        %v1104 = vshrl.u32 %v1103, 7
        %v1105 = vsub.s32 %v1102, %v1104
        %v1106 = vrot.slane %v1098, %v1105
        %v1108 = vunpack.c.l.s4 1934713408
        %v1109 = vunpack.c.0.s8 %v1108
        %v1110 = vlaneseq
        %v1111 = vshrl.u32 %v1110, 7
        %v1112 = vsub.s32 %v1109, %v1111
        %v1113 = vrot.slane %v1099, %v1112
        %v1114 = vcombine.low %v1089, %v1097
        %v1115 = vcombine.high %v1089, %v1097
        %v1117 = vunpack.c.l.s4 1934713408
        %v1118 = vunpack.c.0.s8 %v1117
        %v1119 = vlaneseq
        %v1120 = vshrl.u32 %v1119, 7
        %v1121 = vsub.s32 %v1118, %v1120
        %v1122 = vrot.slane %v1114, %v1121
        %v1124 = vunpack.c.l.s4 1934713408
        %v1125 = vunpack.c.0.s8 %v1124
        %v1126 = vlaneseq
        %v1127 = vshrl.u32 %v1126, 7
        %v1128 = vsub.s32 %v1125, %v1127
        %v1129 = vrot.slane %v1115, %v1128
        %v1130 = vcombine.low %v1106, %v1122
        %v1131 = vcombine.high %v1106, %v1122
        %v1132 = vcombine.low %v1113, %v1129
        %v1133 = vcombine.high %v1113, %v1129
        %v1134 = vcombine.low %v1038, %v1045
        %v1136 = vunpack.c.l.s4 1983009808
        %v1137 = vunpack.c.0.s8 %v1136
        %v1138 = vlaneseq
        %v1139 = vshrl.u32 %v1138, 7
        %v1140 = vsub.s32 %v1137, %v1139
        %v1141 = vrot.slane %v1134, %v1140
        %v1142 = vcombine.low %v1062, %v1063
        %v1144 = vunpack.c.l.s4 1983009808
        %v1145 = vunpack.c.0.s8 %v1144
        %v1146 = vlaneseq
        %v1147 = vshrl.u32 %v1146, 7
        %v1148 = vsub.s32 %v1145, %v1147
        %v1149 = vrot.slane %v1142, %v1148
        %v1150 = vcombine.low %v1054, %v1061
        %v1152 = vunpack.c.l.s4 1983009808
        %v1153 = vunpack.c.0.s8 %v1152
        %v1154 = vlaneseq
        %v1155 = vshrl.u32 %v1154, 7
        %v1156 = vsub.s32 %v1153, %v1155
        %v1157 = vrot.slane %v1150, %v1156
        %v1158 = vcombine.low %v1064, %v1065
        %v1160 = vunpack.c.l.s4 1983009808
        %v1161 = vunpack.c.0.s8 %v1160
        %v1162 = vlaneseq
        %v1163 = vshrl.u32 %v1162, 7
        %v1164 = vsub.s32 %v1161, %v1163
        %v1165 = vrot.slane %v1158, %v1164
        %v1166 = vcombine.low %v1141, %v1149
        %v1167 = vcombine.high %v1141, %v1149
        %v1169 = vunpack.c.l.s4 1934713408
        %v1170 = vunpack.c.0.s8 %v1169
        %v1171 = vlaneseq
        %v1172 = vshrl.u32 %v1171, 7
        %v1173 = vsub.s32 %v1170, %v1172
        %v1174 = vrot.slane %v1166, %v1173
        %v1176 = vunpack.c.l.s4 1934713408
        %v1177 = vunpack.c.0.s8 %v1176
        %v1178 = vlaneseq
        %v1179 = vshrl.u32 %v1178, 7
        %v1180 = vsub.s32 %v1177, %v1179
        %v1181 = vrot.slane %v1167, %v1180
        %v1182 = vcombine.low %v1157, %v1165
        %v1183 = vcombine.high %v1157, %v1165
        %v1185 = vunpack.c.l.s4 1934713408
        %v1186 = vunpack.c.0.s8 %v1185
        %v1187 = vlaneseq
        %v1188 = vshrl.u32 %v1187, 7
        %v1189 = vsub.s32 %v1186, %v1188
        %v1190 = vrot.slane %v1182, %v1189
        %v1192 = vunpack.c.l.s4 1934713408
        %v1193 = vunpack.c.0.s8 %v1192
        %v1194 = vlaneseq
        %v1195 = vshrl.u32 %v1194, 7
        %v1196 = vsub.s32 %v1193, %v1195
        %v1197 = vrot.slane %v1183, %v1196
        %v1198 = vcombine.low %v1174, %v1190
        %v1199 = vcombine.high %v1174, %v1190
        %v1200 = vcombine.low %v1181, %v1197
        %v1201 = vcombine.high %v1181, %v1197
        %v1202 = vpack.c.bf16 %v1130, %v1130
        %v1203 = vpack.c.bf16 %v1131, %v1131
        %v1204 = vpack.c.bf16 %v1132, %v1132
        %v1205 = vpack.c.bf16 %v1133, %v1133
        %v1206 = vpack.c.bf16 %v1198, %v1198
        %v1207 = vpack.c.bf16 %v1199, %v1199
        %v1208 = vpack.c.bf16 %v1200, %v1200
        %v1209 = vpack.c.bf16 %v1201, %v1201
        %1210 = vrot.lane.b32.xlu0 %v596, 64
        %v1211 = vpop.permute.xlu0 %1210
        %1212 = vrot.lane.b32.xlu0 %v599, 64
        %v1213 = vpop.permute.xlu0 %1212
        %1214 = vrot.lane.b32.xlu0 %v609, 64
        %v1215 = vpop.permute.xlu0 %1214
        %1216 = vrot.lane.b32.xlu0 %v611, 64
        %v1217 = vpop.permute.xlu0 %1216
        %1218 = vrot.lane.b32.xlu0 %v615, 64
        %v1219 = vpop.permute.xlu0 %1218
        %1220 = vrot.lane.b32.xlu0 %v617, 64
        %v1221 = vpop.permute.xlu0 %1220
        %1222 = vrot.lane.b32.xlu0 %v621, 64
        %v1223 = vpop.permute.xlu0 %1222
        %1224 = vrot.lane.b32.xlu0 %v623, 64
        %v1225 = vpop.permute.xlu0 %1224
        %v1234 = vcombine.low %v1211, %v1219
        %v1235 = vcombine.high %v1211, %v1219
        %v1237 = vunpack.c.l.s4 1983009808
        %v1238 = vunpack.c.0.s8 %v1237
        %v1239 = vlaneseq
        %v1240 = vshrl.u32 %v1239, 7
        %v1241 = vsub.s32 %v1238, %v1240
        %v1242 = vrot.slane %v1234, %v1241
        %v1244 = vunpack.c.l.s4 1983009808
        %v1245 = vunpack.c.0.s8 %v1244
        %v1246 = vlaneseq
        %v1247 = vshrl.u32 %v1246, 7
        %v1248 = vsub.s32 %v1245, %v1247
        %v1249 = vrot.slane %v1235, %v1248
        %v1250 = vcombine.low %v1215, %v1223
        %v1251 = vcombine.high %v1215, %v1223
        %v1253 = vunpack.c.l.s4 1983009808
        %v1254 = vunpack.c.0.s8 %v1253
        %v1255 = vlaneseq
        %v1256 = vshrl.u32 %v1255, 7
        %v1257 = vsub.s32 %v1254, %v1256
        %v1258 = vrot.slane %v1250, %v1257
        %v1260 = vunpack.c.l.s4 1983009808
        %v1261 = vunpack.c.0.s8 %v1260
        %v1262 = vlaneseq
        %v1263 = vshrl.u32 %v1262, 7
        %v1264 = vsub.s32 %v1261, %v1263
        %v1265 = vrot.slane %v1251, %v1264
        %v1266 = vcombine.low %v1242, %v1258
        %v1267 = vcombine.high %v1242, %v1258
        %v1269 = vunpack.c.l.s4 1934713408
        %v1270 = vunpack.c.0.s8 %v1269
        %v1271 = vlaneseq
        %v1272 = vshrl.u32 %v1271, 7
        %v1273 = vsub.s32 %v1270, %v1272
        %v1274 = vrot.slane %v1266, %v1273
        %v1276 = vunpack.c.l.s4 1934713408
        %v1277 = vunpack.c.0.s8 %v1276
        %v1278 = vlaneseq
        %v1279 = vshrl.u32 %v1278, 7
        %v1280 = vsub.s32 %v1277, %v1279
        %v1281 = vrot.slane %v1267, %v1280
        %v1282 = vcombine.low %v1249, %v1265
        %v1283 = vcombine.high %v1249, %v1265
        %v1285 = vunpack.c.l.s4 1934713408
        %v1286 = vunpack.c.0.s8 %v1285
        %v1287 = vlaneseq
        %v1288 = vshrl.u32 %v1287, 7
        %v1289 = vsub.s32 %v1286, %v1288
        %v1290 = vrot.slane %v1282, %v1289
        %v1292 = vunpack.c.l.s4 1934713408
        %v1293 = vunpack.c.0.s8 %v1292
        %v1294 = vlaneseq
        %v1295 = vshrl.u32 %v1294, 7
        %v1296 = vsub.s32 %v1293, %v1295
        %v1297 = vrot.slane %v1283, %v1296
        %v1298 = vcombine.high %v1274, 0.0
        %v1299 = vcombine.high %v1281, 0.0
        %v1300 = vcombine.high %v1290, 0.0
        %v1301 = vcombine.high %v1297, 0.0
        %v1302 = vcombine.low %v1213, %v1221
        %v1303 = vcombine.high %v1213, %v1221
        %v1305 = vunpack.c.l.s4 1983009808
        %v1306 = vunpack.c.0.s8 %v1305
        %v1307 = vlaneseq
        %v1308 = vshrl.u32 %v1307, 7
        %v1309 = vsub.s32 %v1306, %v1308
        %v1310 = vrot.slane %v1302, %v1309
        %v1312 = vunpack.c.l.s4 1983009808
        %v1313 = vunpack.c.0.s8 %v1312
        %v1314 = vlaneseq
        %v1315 = vshrl.u32 %v1314, 7
        %v1316 = vsub.s32 %v1313, %v1315
        %v1317 = vrot.slane %v1303, %v1316
        %v1318 = vcombine.low %v1217, %v1225
        %v1319 = vcombine.high %v1217, %v1225
        %v1321 = vunpack.c.l.s4 1983009808
        %v1322 = vunpack.c.0.s8 %v1321
        %v1323 = vlaneseq
        %v1324 = vshrl.u32 %v1323, 7
        %v1325 = vsub.s32 %v1322, %v1324
        %v1326 = vrot.slane %v1318, %v1325
        %v1328 = vunpack.c.l.s4 1983009808
        %v1329 = vunpack.c.0.s8 %v1328
        %v1330 = vlaneseq
        %v1331 = vshrl.u32 %v1330, 7
        %v1332 = vsub.s32 %v1329, %v1331
        %v1333 = vrot.slane %v1319, %v1332
        %v1334 = vcombine.low %v1310, %v1326
        %v1335 = vcombine.high %v1310, %v1326
        %v1337 = vunpack.c.l.s4 1934713408
        %v1338 = vunpack.c.0.s8 %v1337
        %v1339 = vlaneseq
        %v1340 = vshrl.u32 %v1339, 7
        %v1341 = vsub.s32 %v1338, %v1340
        %v1342 = vrot.slane %v1334, %v1341
        %v1344 = vunpack.c.l.s4 1934713408
        %v1345 = vunpack.c.0.s8 %v1344
        %v1346 = vlaneseq
        %v1347 = vshrl.u32 %v1346, 7
        %v1348 = vsub.s32 %v1345, %v1347
        %v1349 = vrot.slane %v1335, %v1348
        %v1350 = vcombine.low %v1317, %v1333
        %v1351 = vcombine.high %v1317, %v1333
        %v1353 = vunpack.c.l.s4 1934713408
        %v1354 = vunpack.c.0.s8 %v1353
        %v1355 = vlaneseq
        %v1356 = vshrl.u32 %v1355, 7
        %v1357 = vsub.s32 %v1354, %v1356
        %v1358 = vrot.slane %v1350, %v1357
        %v1360 = vunpack.c.l.s4 1934713408
        %v1361 = vunpack.c.0.s8 %v1360
        %v1362 = vlaneseq
        %v1363 = vshrl.u32 %v1362, 7
        %v1364 = vsub.s32 %v1361, %v1363
        %v1365 = vrot.slane %v1351, %v1364
        %v1366 = vcombine.high %v1342, 0.0
        %v1367 = vcombine.high %v1349, 0.0
        %v1368 = vcombine.high %v1358, 0.0
        %v1369 = vcombine.high %v1365, 0.0
        %v1370 = vcombine.low %v1274, %v1281
        %v1372 = vunpack.c.l.s4 1983009808
        %v1373 = vunpack.c.0.s8 %v1372
        %v1374 = vlaneseq
        %v1375 = vshrl.u32 %v1374, 7
        %v1376 = vsub.s32 %v1373, %v1375
        %v1377 = vrot.slane %v1370, %v1376
        %v1378 = vcombine.low %v1298, %v1299
        %v1380 = vunpack.c.l.s4 1983009808
        %v1381 = vunpack.c.0.s8 %v1380
        %v1382 = vlaneseq
        %v1383 = vshrl.u32 %v1382, 7
        %v1384 = vsub.s32 %v1381, %v1383
        %v1385 = vrot.slane %v1378, %v1384
        %v1386 = vcombine.low %v1290, %v1297
        %v1388 = vunpack.c.l.s4 1983009808
        %v1389 = vunpack.c.0.s8 %v1388
        %v1390 = vlaneseq
        %v1391 = vshrl.u32 %v1390, 7
        %v1392 = vsub.s32 %v1389, %v1391
        %v1393 = vrot.slane %v1386, %v1392
        %v1394 = vcombine.low %v1300, %v1301
        %v1396 = vunpack.c.l.s4 1983009808
        %v1397 = vunpack.c.0.s8 %v1396
        %v1398 = vlaneseq
        %v1399 = vshrl.u32 %v1398, 7
        %v1400 = vsub.s32 %v1397, %v1399
        %v1401 = vrot.slane %v1394, %v1400
        %v1402 = vcombine.low %v1377, %v1385
        %v1403 = vcombine.high %v1377, %v1385
        %v1405 = vunpack.c.l.s4 1934713408
        %v1406 = vunpack.c.0.s8 %v1405
        %v1407 = vlaneseq
        %v1408 = vshrl.u32 %v1407, 7
        %v1409 = vsub.s32 %v1406, %v1408
        %v1410 = vrot.slane %v1402, %v1409
        %v1412 = vunpack.c.l.s4 1934713408
        %v1413 = vunpack.c.0.s8 %v1412
        %v1414 = vlaneseq
        %v1415 = vshrl.u32 %v1414, 7
        %v1416 = vsub.s32 %v1413, %v1415
        %v1417 = vrot.slane %v1403, %v1416
        %v1418 = vcombine.low %v1393, %v1401
        %v1419 = vcombine.high %v1393, %v1401
        %v1421 = vunpack.c.l.s4 1934713408
        %v1422 = vunpack.c.0.s8 %v1421
        %v1423 = vlaneseq
        %v1424 = vshrl.u32 %v1423, 7
        %v1425 = vsub.s32 %v1422, %v1424
        %v1426 = vrot.slane %v1418, %v1425
        %v1428 = vunpack.c.l.s4 1934713408
        %v1429 = vunpack.c.0.s8 %v1428
        %v1430 = vlaneseq
        %v1431 = vshrl.u32 %v1430, 7
        %v1432 = vsub.s32 %v1429, %v1431
        %v1433 = vrot.slane %v1419, %v1432
        %v1434 = vcombine.low %v1410, %v1426
        %v1435 = vcombine.high %v1410, %v1426
        %v1436 = vcombine.low %v1417, %v1433
        %v1437 = vcombine.high %v1417, %v1433
        %v1438 = vcombine.low %v1342, %v1349
        %v1440 = vunpack.c.l.s4 1983009808
        %v1441 = vunpack.c.0.s8 %v1440
        %v1442 = vlaneseq
        %v1443 = vshrl.u32 %v1442, 7
        %v1444 = vsub.s32 %v1441, %v1443
        %v1445 = vrot.slane %v1438, %v1444
        %v1446 = vcombine.low %v1366, %v1367
        %v1448 = vunpack.c.l.s4 1983009808
        %v1449 = vunpack.c.0.s8 %v1448
        %v1450 = vlaneseq
        %v1451 = vshrl.u32 %v1450, 7
        %v1452 = vsub.s32 %v1449, %v1451
        %v1453 = vrot.slane %v1446, %v1452
        %v1454 = vcombine.low %v1358, %v1365
        %v1456 = vunpack.c.l.s4 1983009808
        %v1457 = vunpack.c.0.s8 %v1456
        %v1458 = vlaneseq
        %v1459 = vshrl.u32 %v1458, 7
        %v1460 = vsub.s32 %v1457, %v1459
        %v1461 = vrot.slane %v1454, %v1460
        %v1462 = vcombine.low %v1368, %v1369
        %v1464 = vunpack.c.l.s4 1983009808
        %v1465 = vunpack.c.0.s8 %v1464
        %v1466 = vlaneseq
        %v1467 = vshrl.u32 %v1466, 7
        %v1468 = vsub.s32 %v1465, %v1467
        %v1469 = vrot.slane %v1462, %v1468
        %v1470 = vcombine.low %v1445, %v1453
        %v1471 = vcombine.high %v1445, %v1453
        %v1473 = vunpack.c.l.s4 1934713408
        %v1474 = vunpack.c.0.s8 %v1473
        %v1475 = vlaneseq
        %v1476 = vshrl.u32 %v1475, 7
        %v1477 = vsub.s32 %v1474, %v1476
        %v1478 = vrot.slane %v1470, %v1477
        %v1480 = vunpack.c.l.s4 1934713408
        %v1481 = vunpack.c.0.s8 %v1480
        %v1482 = vlaneseq
        %v1483 = vshrl.u32 %v1482, 7
        %v1484 = vsub.s32 %v1481, %v1483
        %v1485 = vrot.slane %v1471, %v1484
        %v1486 = vcombine.low %v1461, %v1469
        %v1487 = vcombine.high %v1461, %v1469
        %v1489 = vunpack.c.l.s4 1934713408
        %v1490 = vunpack.c.0.s8 %v1489
        %v1491 = vlaneseq
        %v1492 = vshrl.u32 %v1491, 7
        %v1493 = vsub.s32 %v1490, %v1492
        %v1494 = vrot.slane %v1486, %v1493
        %v1496 = vunpack.c.l.s4 1934713408
        %v1497 = vunpack.c.0.s8 %v1496
        %v1498 = vlaneseq
        %v1499 = vshrl.u32 %v1498, 7
        %v1500 = vsub.s32 %v1497, %v1499
        %v1501 = vrot.slane %v1487, %v1500
        %v1502 = vcombine.low %v1478, %v1494
        %v1503 = vcombine.high %v1478, %v1494
        %v1504 = vcombine.low %v1485, %v1501
        %v1505 = vcombine.high %v1485, %v1501
        %v1506 = vpack.c.bf16 %v1434, %v1434
        %v1507 = vpack.c.bf16 %v1435, %v1435
        %v1508 = vpack.c.bf16 %v1436, %v1436
        %v1509 = vpack.c.bf16 %v1437, %v1437
        %v1510 = vpack.c.bf16 %v1502, %v1502
        %v1511 = vpack.c.bf16 %v1503, %v1503
        %v1512 = vpack.c.bf16 %v1504, %v1504
        %v1513 = vpack.c.bf16 %v1505, %v1505
        %vm1514 = vcmask 64512
        %v1516 = vsel %vm1514, %v898, 0
        %v1519 = vsel %vm1514, %v1202, 0
        %1521 = vmatprep.subr.bf16.mxu0 0
        %1522 = vmatpush1.bf16.xpose.msra.mxu0 0
        %1523 = vmatprep.subr.bf16.mxu0 0
        %1524 = vmatpush1.bf16.xpose.msra.mxu0 0
        %1525 = vmatprep.subr.bf16.mxu0 0
        %1526 = vmatpush1.bf16.xpose.msra.mxu0 0
        %1527 = vmatprep.subr.bf16.mxu0 0
        %1528 = vmatpush1.bf16.xpose.msra.mxu0 0
        %1529 = vmatprep.subr.bf16.mxu0 0
        %1530 = vmatpush1.bf16.xpose.msra.mxu0 0
        %1531 = vmatprep.subr.bf16.mxu0 0
        %1532 = vmatpush1.bf16.xpose.msra.mxu0 0
        %1533 = vmatprep.subr.bf16.mxu0 0
        %1534 = vmatpush1.bf16.xpose.msra.mxu0 0
        %1535 = vmatprep.subr.bf16.mxu0 0
        %1536 = vmatpush1.bf16.xpose.msra.mxu0 %v1519
        %1537 = vmatprep.subr.bf16.mxu0 0
        %1538 = vmatpush2.bf16.xpose.msra.mxu0 0
        %1539 = vmatprep.subr.bf16.mxu0 0
        %1540 = vmatpush2.bf16.xpose.msra.mxu0 0
        %1541 = vmatprep.subr.bf16.mxu0 0
        %1542 = vmatpush2.bf16.xpose.msra.mxu0 0
        %1543 = vmatprep.subr.bf16.mxu0 0
        %1544 = vmatpush2.bf16.xpose.msra.mxu0 0
        %1545 = vmatprep.subr.bf16.mxu0 0
        %1546 = vmatpush2.bf16.xpose.msra.mxu0 0
        %1547 = vmatprep.subr.bf16.mxu0 0
        %1548 = vmatpush2.bf16.xpose.msra.mxu0 0
        %1549 = vmatprep.subr.bf16.mxu0 0
        %1550 = vmatpush2.bf16.xpose.msra.mxu0 0
        %1551 = vmatprep.subr.bf16.mxu0 0
        %1552 = vmatpush2.bf16.xpose.msra.mxu0 0
        %1553 = vmatprep.mubr.bf16.mxu0 0
        %1554 = vmatmul.mubr.bf16.gmra.mxu0 %v1516
        %v1555 = vpop.f32.mrf.mxu0
        %v1556 = vadd.f32 0.0, %v1555
        %v1557 = vpop.f32.mrf.mxu0
        %v1558 = vpop.f32.mrf.mxu0
        %v1559 = vpop.f32.mrf.mxu0
        %1560 = vdwg.mxu0
        %v1562 = vsel %vm1514, %v899, 0
        %v1565 = vsel %vm1514, %v1203, 0
        %1567 = vmatprep.subr.bf16.mxu0 0
        %1568 = vmatpush1.bf16.xpose.msra.mxu0 0
        %1569 = vmatprep.subr.bf16.mxu0 0
        %1570 = vmatpush1.bf16.xpose.msra.mxu0 0
        %1571 = vmatprep.subr.bf16.mxu0 0
        %1572 = vmatpush1.bf16.xpose.msra.mxu0 0
        %1573 = vmatprep.subr.bf16.mxu0 0
        %1574 = vmatpush1.bf16.xpose.msra.mxu0 0
        %1575 = vmatprep.subr.bf16.mxu0 0
        %1576 = vmatpush1.bf16.xpose.msra.mxu0 0
        %1577 = vmatprep.subr.bf16.mxu0 0
        %1578 = vmatpush1.bf16.xpose.msra.mxu0 0
        %1579 = vmatprep.subr.bf16.mxu0 0
        %1580 = vmatpush1.bf16.xpose.msra.mxu0 0
        %1581 = vmatprep.subr.bf16.mxu0 0
        %1582 = vmatpush1.bf16.xpose.msra.mxu0 %v1565
        %1583 = vmatprep.subr.bf16.mxu0 0
        %1584 = vmatpush2.bf16.xpose.msra.mxu0 0
        %1585 = vmatprep.subr.bf16.mxu0 0
        %1586 = vmatpush2.bf16.xpose.msra.mxu0 0
        %1587 = vmatprep.subr.bf16.mxu0 0
        %1588 = vmatpush2.bf16.xpose.msra.mxu0 0
        %1589 = vmatprep.subr.bf16.mxu0 0
        %1590 = vmatpush2.bf16.xpose.msra.mxu0 0
        %1591 = vmatprep.subr.bf16.mxu0 0
        %1592 = vmatpush2.bf16.xpose.msra.mxu0 0
        %1593 = vmatprep.subr.bf16.mxu0 0
        %1594 = vmatpush2.bf16.xpose.msra.mxu0 0
        %1595 = vmatprep.subr.bf16.mxu0 0
        %1596 = vmatpush2.bf16.xpose.msra.mxu0 0
        %1597 = vmatprep.subr.bf16.mxu0 0
        %1598 = vmatpush2.bf16.xpose.msra.mxu0 0
        %1599 = vmatprep.mubr.bf16.mxu0 0
        %1600 = vmatmul.mubr.bf16.gmra.mxu0 %v1562
        %v1601 = vpop.f32.mrf.mxu0
        %v1602 = vadd.f32 0.0, %v1601
        %v1603 = vpop.f32.mrf.mxu0
        %v1604 = vpop.f32.mrf.mxu0
        %v1605 = vpop.f32.mrf.mxu0
        %1606 = vdwg.mxu0
        %v1608 = vsel %vm1514, %v900, 0
        %v1611 = vsel %vm1514, %v1204, 0
        %1613 = vmatprep.subr.bf16.mxu0 0
        %1614 = vmatpush1.bf16.xpose.msra.mxu0 0
        %1615 = vmatprep.subr.bf16.mxu0 0
        %1616 = vmatpush1.bf16.xpose.msra.mxu0 0
        %1617 = vmatprep.subr.bf16.mxu0 0
        %1618 = vmatpush1.bf16.xpose.msra.mxu0 0
        %1619 = vmatprep.subr.bf16.mxu0 0
        %1620 = vmatpush1.bf16.xpose.msra.mxu0 0
        %1621 = vmatprep.subr.bf16.mxu0 0
        %1622 = vmatpush1.bf16.xpose.msra.mxu0 0
        %1623 = vmatprep.subr.bf16.mxu0 0
        %1624 = vmatpush1.bf16.xpose.msra.mxu0 0
        %1625 = vmatprep.subr.bf16.mxu0 0
        %1626 = vmatpush1.bf16.xpose.msra.mxu0 0
        %1627 = vmatprep.subr.bf16.mxu0 0
        %1628 = vmatpush1.bf16.xpose.msra.mxu0 %v1611
        %1629 = vmatprep.subr.bf16.mxu0 0
        %1630 = vmatpush2.bf16.xpose.msra.mxu0 0
        %1631 = vmatprep.subr.bf16.mxu0 0
        %1632 = vmatpush2.bf16.xpose.msra.mxu0 0
        %1633 = vmatprep.subr.bf16.mxu0 0
        %1634 = vmatpush2.bf16.xpose.msra.mxu0 0
        %1635 = vmatprep.subr.bf16.mxu0 0
        %1636 = vmatpush2.bf16.xpose.msra.mxu0 0
        %1637 = vmatprep.subr.bf16.mxu0 0
        %1638 = vmatpush2.bf16.xpose.msra.mxu0 0
        %1639 = vmatprep.subr.bf16.mxu0 0
        %1640 = vmatpush2.bf16.xpose.msra.mxu0 0
        %1641 = vmatprep.subr.bf16.mxu0 0
        %1642 = vmatpush2.bf16.xpose.msra.mxu0 0
        %1643 = vmatprep.subr.bf16.mxu0 0
        %1644 = vmatpush2.bf16.xpose.msra.mxu0 0
        %1645 = vmatprep.mubr.bf16.mxu0 0
        %1646 = vmatmul.mubr.bf16.gmra.mxu0 %v1608
        %v1647 = vpop.f32.mrf.mxu0
        %v1648 = vadd.f32 0.0, %v1647
        %v1649 = vpop.f32.mrf.mxu0
        %v1650 = vpop.f32.mrf.mxu0
        %v1651 = vpop.f32.mrf.mxu0
        %1652 = vdwg.mxu0
        %v1654 = vsel %vm1514, %v901, 0
        %v1657 = vsel %vm1514, %v1205, 0
        %1659 = vmatprep.subr.bf16.mxu0 0
        %1660 = vmatpush1.bf16.xpose.msra.mxu0 0
        %1661 = vmatprep.subr.bf16.mxu0 0
        %1662 = vmatpush1.bf16.xpose.msra.mxu0 0
        %1663 = vmatprep.subr.bf16.mxu0 0
        %1664 = vmatpush1.bf16.xpose.msra.mxu0 0
        %1665 = vmatprep.subr.bf16.mxu0 0
        %1666 = vmatpush1.bf16.xpose.msra.mxu0 0
        %1667 = vmatprep.subr.bf16.mxu0 0
        %1668 = vmatpush1.bf16.xpose.msra.mxu0 0
        %1669 = vmatprep.subr.bf16.mxu0 0
        %1670 = vmatpush1.bf16.xpose.msra.mxu0 0
        %1671 = vmatprep.subr.bf16.mxu0 0
        %1672 = vmatpush1.bf16.xpose.msra.mxu0 0
        %1673 = vmatprep.subr.bf16.mxu0 0
        %1674 = vmatpush1.bf16.xpose.msra.mxu0 %v1657
        %1675 = vmatprep.subr.bf16.mxu0 0
        %1676 = vmatpush2.bf16.xpose.msra.mxu0 0
        %1677 = vmatprep.subr.bf16.mxu0 0
        %1678 = vmatpush2.bf16.xpose.msra.mxu0 0
        %1679 = vmatprep.subr.bf16.mxu0 0
        %1680 = vmatpush2.bf16.xpose.msra.mxu0 0
        %1681 = vmatprep.subr.bf16.mxu0 0
        %1682 = vmatpush2.bf16.xpose.msra.mxu0 0
        %1683 = vmatprep.subr.bf16.mxu0 0
        %1684 = vmatpush2.bf16.xpose.msra.mxu0 0
        %1685 = vmatprep.subr.bf16.mxu0 0
        %1686 = vmatpush2.bf16.xpose.msra.mxu0 0
        %1687 = vmatprep.subr.bf16.mxu0 0
        %1688 = vmatpush2.bf16.xpose.msra.mxu0 0
        %1689 = vmatprep.subr.bf16.mxu0 0
        %1690 = vmatpush2.bf16.xpose.msra.mxu0 0
        %1691 = vmatprep.mubr.bf16.mxu0 0
        %1692 = vmatmul.mubr.bf16.gmra.mxu0 %v1654
        %v1693 = vpop.f32.mrf.mxu0
        %v1694 = vadd.f32 0.0, %v1693
        %v1695 = vpop.f32.mrf.mxu0
        %v1696 = vpop.f32.mrf.mxu0
        %v1697 = vpop.f32.mrf.mxu0
        %1698 = vdwg.mxu0
        %v1700 = vsel %vm1514, %v902, 0
        %v1703 = vsel %vm1514, %v1206, 0
        %1705 = vmatprep.subr.bf16.mxu0 0
        %1706 = vmatpush1.bf16.xpose.msra.mxu0 0
        %1707 = vmatprep.subr.bf16.mxu0 0
        %1708 = vmatpush1.bf16.xpose.msra.mxu0 0
        %1709 = vmatprep.subr.bf16.mxu0 0
        %1710 = vmatpush1.bf16.xpose.msra.mxu0 0
        %1711 = vmatprep.subr.bf16.mxu0 0
        %1712 = vmatpush1.bf16.xpose.msra.mxu0 0
        %1713 = vmatprep.subr.bf16.mxu0 0
        %1714 = vmatpush1.bf16.xpose.msra.mxu0 0
        %1715 = vmatprep.subr.bf16.mxu0 0
        %1716 = vmatpush1.bf16.xpose.msra.mxu0 0
        %1717 = vmatprep.subr.bf16.mxu0 0
        %1718 = vmatpush1.bf16.xpose.msra.mxu0 0
        %1719 = vmatprep.subr.bf16.mxu0 0
        %1720 = vmatpush1.bf16.xpose.msra.mxu0 %v1703
        %1721 = vmatprep.subr.bf16.mxu0 0
        %1722 = vmatpush2.bf16.xpose.msra.mxu0 0
        %1723 = vmatprep.subr.bf16.mxu0 0
        %1724 = vmatpush2.bf16.xpose.msra.mxu0 0
        %1725 = vmatprep.subr.bf16.mxu0 0
        %1726 = vmatpush2.bf16.xpose.msra.mxu0 0
        %1727 = vmatprep.subr.bf16.mxu0 0
        %1728 = vmatpush2.bf16.xpose.msra.mxu0 0
        %1729 = vmatprep.subr.bf16.mxu0 0
        %1730 = vmatpush2.bf16.xpose.msra.mxu0 0
        %1731 = vmatprep.subr.bf16.mxu0 0
        %1732 = vmatpush2.bf16.xpose.msra.mxu0 0
        %1733 = vmatprep.subr.bf16.mxu0 0
        %1734 = vmatpush2.bf16.xpose.msra.mxu0 0
        %1735 = vmatprep.subr.bf16.mxu0 0
        %1736 = vmatpush2.bf16.xpose.msra.mxu0 0
        %1737 = vmatprep.mubr.bf16.mxu0 0
        %1738 = vmatmul.mubr.bf16.gmra.mxu0 %v1700
        %v1739 = vpop.f32.mrf.mxu0
        %v1740 = vadd.f32 0.0, %v1739
        %v1741 = vpop.f32.mrf.mxu0
        %v1742 = vpop.f32.mrf.mxu0
        %v1743 = vpop.f32.mrf.mxu0
        %1744 = vdwg.mxu0
        %v1746 = vsel %vm1514, %v903, 0
        %v1749 = vsel %vm1514, %v1207, 0
        %1751 = vmatprep.subr.bf16.mxu0 0
        %1752 = vmatpush1.bf16.xpose.msra.mxu0 0
        %1753 = vmatprep.subr.bf16.mxu0 0
        %1754 = vmatpush1.bf16.xpose.msra.mxu0 0
        %1755 = vmatprep.subr.bf16.mxu0 0
        %1756 = vmatpush1.bf16.xpose.msra.mxu0 0
        %1757 = vmatprep.subr.bf16.mxu0 0
        %1758 = vmatpush1.bf16.xpose.msra.mxu0 0
        %1759 = vmatprep.subr.bf16.mxu0 0
        %1760 = vmatpush1.bf16.xpose.msra.mxu0 0
        %1761 = vmatprep.subr.bf16.mxu0 0
        %1762 = vmatpush1.bf16.xpose.msra.mxu0 0
        %1763 = vmatprep.subr.bf16.mxu0 0
        %1764 = vmatpush1.bf16.xpose.msra.mxu0 0
        %1765 = vmatprep.subr.bf16.mxu0 0
        %1766 = vmatpush1.bf16.xpose.msra.mxu0 %v1749
        %1767 = vmatprep.subr.bf16.mxu0 0
        %1768 = vmatpush2.bf16.xpose.msra.mxu0 0
        %1769 = vmatprep.subr.bf16.mxu0 0
        %1770 = vmatpush2.bf16.xpose.msra.mxu0 0
        %1771 = vmatprep.subr.bf16.mxu0 0
        %1772 = vmatpush2.bf16.xpose.msra.mxu0 0
        %1773 = vmatprep.subr.bf16.mxu0 0
        %1774 = vmatpush2.bf16.xpose.msra.mxu0 0
        %1775 = vmatprep.subr.bf16.mxu0 0
        %1776 = vmatpush2.bf16.xpose.msra.mxu0 0
        %1777 = vmatprep.subr.bf16.mxu0 0
        %1778 = vmatpush2.bf16.xpose.msra.mxu0 0
        %1779 = vmatprep.subr.bf16.mxu0 0
        %1780 = vmatpush2.bf16.xpose.msra.mxu0 0
        %1781 = vmatprep.subr.bf16.mxu0 0
        %1782 = vmatpush2.bf16.xpose.msra.mxu0 0
        %1783 = vmatprep.mubr.bf16.mxu0 0
        %1784 = vmatmul.mubr.bf16.gmra.mxu0 %v1746
        %v1785 = vpop.f32.mrf.mxu0
        %v1786 = vadd.f32 0.0, %v1785
        %v1787 = vpop.f32.mrf.mxu0
        %v1788 = vpop.f32.mrf.mxu0
        %v1789 = vpop.f32.mrf.mxu0
        %1790 = vdwg.mxu0
        %v1792 = vsel %vm1514, %v904, 0
        %v1795 = vsel %vm1514, %v1208, 0
        %1797 = vmatprep.subr.bf16.mxu0 0
        %1798 = vmatpush1.bf16.xpose.msra.mxu0 0
        %1799 = vmatprep.subr.bf16.mxu0 0
        %1800 = vmatpush1.bf16.xpose.msra.mxu0 0
        %1801 = vmatprep.subr.bf16.mxu0 0
        %1802 = vmatpush1.bf16.xpose.msra.mxu0 0
        %1803 = vmatprep.subr.bf16.mxu0 0
        %1804 = vmatpush1.bf16.xpose.msra.mxu0 0
        %1805 = vmatprep.subr.bf16.mxu0 0
        %1806 = vmatpush1.bf16.xpose.msra.mxu0 0
        %1807 = vmatprep.subr.bf16.mxu0 0
        %1808 = vmatpush1.bf16.xpose.msra.mxu0 0
        %1809 = vmatprep.subr.bf16.mxu0 0
        %1810 = vmatpush1.bf16.xpose.msra.mxu0 0
        %1811 = vmatprep.subr.bf16.mxu0 0
        %1812 = vmatpush1.bf16.xpose.msra.mxu0 %v1795
        %1813 = vmatprep.subr.bf16.mxu0 0
        %1814 = vmatpush2.bf16.xpose.msra.mxu0 0
        %1815 = vmatprep.subr.bf16.mxu0 0
        %1816 = vmatpush2.bf16.xpose.msra.mxu0 0
        %1817 = vmatprep.subr.bf16.mxu0 0
        %1818 = vmatpush2.bf16.xpose.msra.mxu0 0
        %1819 = vmatprep.subr.bf16.mxu0 0
        %1820 = vmatpush2.bf16.xpose.msra.mxu0 0
        %1821 = vmatprep.subr.bf16.mxu0 0
        %1822 = vmatpush2.bf16.xpose.msra.mxu0 0
        %1823 = vmatprep.subr.bf16.mxu0 0
        %1824 = vmatpush2.bf16.xpose.msra.mxu0 0
        %1825 = vmatprep.subr.bf16.mxu0 0
        %1826 = vmatpush2.bf16.xpose.msra.mxu0 0
        %1827 = vmatprep.subr.bf16.mxu0 0
        %1828 = vmatpush2.bf16.xpose.msra.mxu0 0
        %1829 = vmatprep.mubr.bf16.mxu0 0
        %1830 = vmatmul.mubr.bf16.gmra.mxu0 %v1792
        %v1831 = vpop.f32.mrf.mxu0
        %v1832 = vadd.f32 0.0, %v1831
        %v1833 = vpop.f32.mrf.mxu0
        %v1834 = vpop.f32.mrf.mxu0
        %v1835 = vpop.f32.mrf.mxu0
        %1836 = vdwg.mxu0
        %v1838 = vsel %vm1514, %v905, 0
        %v1841 = vsel %vm1514, %v1209, 0
        %1843 = vmatprep.subr.bf16.mxu0 0
        %1844 = vmatpush1.bf16.xpose.msra.mxu0 0
        %1845 = vmatprep.subr.bf16.mxu0 0
        %1846 = vmatpush1.bf16.xpose.msra.mxu0 0
        %1847 = vmatprep.subr.bf16.mxu0 0
        %1848 = vmatpush1.bf16.xpose.msra.mxu0 0
        %1849 = vmatprep.subr.bf16.mxu0 0
        %1850 = vmatpush1.bf16.xpose.msra.mxu0 0
        %1851 = vmatprep.subr.bf16.mxu0 0
        %1852 = vmatpush1.bf16.xpose.msra.mxu0 0
        %1853 = vmatprep.subr.bf16.mxu0 0
        %1854 = vmatpush1.bf16.xpose.msra.mxu0 0
        %1855 = vmatprep.subr.bf16.mxu0 0
        %1856 = vmatpush1.bf16.xpose.msra.mxu0 0
        %1857 = vmatprep.subr.bf16.mxu0 0
        %1858 = vmatpush1.bf16.xpose.msra.mxu0 %v1841
        %1859 = vmatprep.subr.bf16.mxu0 0
        %1860 = vmatpush2.bf16.xpose.msra.mxu0 0
        %1861 = vmatprep.subr.bf16.mxu0 0
        %1862 = vmatpush2.bf16.xpose.msra.mxu0 0
        %1863 = vmatprep.subr.bf16.mxu0 0
        %1864 = vmatpush2.bf16.xpose.msra.mxu0 0
        %1865 = vmatprep.subr.bf16.mxu0 0
        %1866 = vmatpush2.bf16.xpose.msra.mxu0 0
        %1867 = vmatprep.subr.bf16.mxu0 0
        %1868 = vmatpush2.bf16.xpose.msra.mxu0 0
        %1869 = vmatprep.subr.bf16.mxu0 0
        %1870 = vmatpush2.bf16.xpose.msra.mxu0 0
        %1871 = vmatprep.subr.bf16.mxu0 0
        %1872 = vmatpush2.bf16.xpose.msra.mxu0 0
        %1873 = vmatprep.subr.bf16.mxu0 0
        %1874 = vmatpush2.bf16.xpose.msra.mxu0 0
        %1875 = vmatprep.mubr.bf16.mxu0 0
        %1876 = vmatmul.mubr.bf16.gmra.mxu0 %v1838
        %v1877 = vpop.f32.mrf.mxu0
        %v1878 = vadd.f32 0.0, %v1877
        %v1879 = vpop.f32.mrf.mxu0
        %v1880 = vpop.f32.mrf.mxu0
        %v1881 = vpop.f32.mrf.mxu0
        %1882 = vdwg.mxu0
        %v1883 = vsel %vm1514, %v1556, -inf
        %1884 = vmax.xlane.f32.xlu0 %v1883
        %v1885 = vpop.xlane.xlu0 %1884
        %v1886 = vsel %vm1514, %v1602, -inf
        %1887 = vmax.xlane.f32.xlu0 %v1886
        %v1888 = vpop.xlane.xlu0 %1887
        %v1889 = vsel %vm1514, %v1648, -inf
        %1890 = vmax.xlane.f32.xlu0 %v1889
        %v1891 = vpop.xlane.xlu0 %1890
        %v1892 = vsel %vm1514, %v1694, -inf
        %1893 = vmax.xlane.f32.xlu0 %v1892
        %v1894 = vpop.xlane.xlu0 %1893
        %v1895 = vsel %vm1514, %v1740, -inf
        %1896 = vmax.xlane.f32.xlu0 %v1895
        %v1897 = vpop.xlane.xlu0 %1896
        %v1898 = vsel %vm1514, %v1786, -inf
        %1899 = vmax.xlane.f32.xlu0 %v1898
        %v1900 = vpop.xlane.xlu0 %1899
        %v1901 = vsel %vm1514, %v1832, -inf
        %1902 = vmax.xlane.f32.xlu0 %v1901
        %v1903 = vpop.xlane.xlu0 %1902
        %v1904 = vsel %vm1514, %v1878, -inf
        %1905 = vmax.xlane.f32.xlu0 %v1904
        %v1906 = vpop.xlane.xlu0 %1905
        %v1907 = vsub.f32 %v1556, %v1885
        %v1908 = vsub.f32 %v1602, %v1888
        %v1909 = vsub.f32 %v1648, %v1891
        %v1910 = vsub.f32 %v1694, %v1894
        %v1911 = vsub.f32 %v1740, %v1897
        %v1912 = vsub.f32 %v1786, %v1900
        %v1913 = vsub.f32 %v1832, %v1903
        %v1914 = vsub.f32 %v1878, %v1906
        %v1915 = vmul.f32 %v1907, 1.442695
        %v1916 = vpow.pop %v1915
        %v1917 = vmul.f32 %v1908, 1.442695
        %v1918 = vpow.pop %v1917
        %v1919 = vmul.f32 %v1909, 1.442695
        %v1920 = vpow.pop %v1919
        %v1921 = vmul.f32 %v1910, 1.442695
        %v1922 = vpow.pop %v1921
        %v1923 = vmul.f32 %v1911, 1.442695
        %v1924 = vpow.pop %v1923
        %v1925 = vmul.f32 %v1912, 1.442695
        %v1926 = vpow.pop %v1925
        %v1927 = vmul.f32 %v1913, 1.442695
        %v1928 = vpow.pop %v1927
        %v1929 = vmul.f32 %v1914, 1.442695
        %v1930 = vpow.pop %v1929
        %v1931 = vsel %vm1514, %v1916, 0.0
        %1932 = vadd.xlane.f32.xlu0 %v1931
        %v1933 = vpop.xlane.xlu0 %1932
        %v1934 = vsel %vm1514, %v1918, 0.0
        %1935 = vadd.xlane.f32.xlu0 %v1934
        %v1936 = vpop.xlane.xlu0 %1935
        %v1937 = vsel %vm1514, %v1920, 0.0
        %1938 = vadd.xlane.f32.xlu0 %v1937
        %v1939 = vpop.xlane.xlu0 %1938
        %v1940 = vsel %vm1514, %v1922, 0.0
        %1941 = vadd.xlane.f32.xlu0 %v1940
        %v1942 = vpop.xlane.xlu0 %1941
        %v1943 = vsel %vm1514, %v1924, 0.0
        %1944 = vadd.xlane.f32.xlu0 %v1943
        %v1945 = vpop.xlane.xlu0 %1944
        %v1946 = vsel %vm1514, %v1926, 0.0
        %1947 = vadd.xlane.f32.xlu0 %v1946
        %v1948 = vpop.xlane.xlu0 %1947
        %v1949 = vsel %vm1514, %v1928, 0.0
        %1950 = vadd.xlane.f32.xlu0 %v1949
        %v1951 = vpop.xlane.xlu0 %1950
        %v1952 = vsel %vm1514, %v1930, 0.0
        %1953 = vadd.xlane.f32.xlu0 %v1952
        %v1954 = vpop.xlane.xlu0 %1953
        %v1955 = vpack.c.bf16 %v1916, %v1916
        %v1956 = vpack.c.bf16 %v1918, %v1918
        %v1957 = vpack.c.bf16 %v1920, %v1920
        %v1958 = vpack.c.bf16 %v1922, %v1922
        %v1959 = vpack.c.bf16 %v1924, %v1924
        %v1960 = vpack.c.bf16 %v1926, %v1926
        %v1961 = vpack.c.bf16 %v1928, %v1928
        %v1962 = vpack.c.bf16 %v1930, %v1930
        %v1964 = vsel %vm1514, %v1955, 0
        %vm1966 = vcmask 1043456
        %v1968 = vsel %vm1966, %v1506, 0
        %1970 = vmatprep.subr.bf16.mxu0 0
        %1971 = vmatpush1.bf16.msra.mxu0 0
        %1972 = vmatprep.subr.bf16.mxu0 0
        %1973 = vmatpush1.bf16.msra.mxu0 0
        %1974 = vmatprep.subr.bf16.mxu0 0
        %1975 = vmatpush1.bf16.msra.mxu0 0
        %1976 = vmatprep.subr.bf16.mxu0 0
        %1977 = vmatpush1.bf16.msra.mxu0 0
        %1978 = vmatprep.subr.bf16.mxu0 0
        %1979 = vmatpush1.bf16.msra.mxu0 0
        %1980 = vmatprep.subr.bf16.mxu0 0
        %1981 = vmatpush1.bf16.msra.mxu0 0
        %1982 = vmatprep.subr.bf16.mxu0 0
        %1983 = vmatpush1.bf16.msra.mxu0 0
        %1984 = vmatprep.subr.bf16.mxu0 0
        %1985 = vmatpush1.bf16.msra.mxu0 %v1968
        %1986 = vmatprep.subr.bf16.mxu0 0
        %1987 = vmatpush2.bf16.msra.mxu0 0
        %1988 = vmatprep.subr.bf16.mxu0 0
        %1989 = vmatpush2.bf16.msra.mxu0 0
        %1990 = vmatprep.subr.bf16.mxu0 0
        %1991 = vmatpush2.bf16.msra.mxu0 0
        %1992 = vmatprep.subr.bf16.mxu0 0
        %1993 = vmatpush2.bf16.msra.mxu0 0
        %1994 = vmatprep.subr.bf16.mxu0 0
        %1995 = vmatpush2.bf16.msra.mxu0 0
        %1996 = vmatprep.subr.bf16.mxu0 0
        %1997 = vmatpush2.bf16.msra.mxu0 0
        %1998 = vmatprep.subr.bf16.mxu0 0
        %1999 = vmatpush2.bf16.msra.mxu0 0
        %2000 = vmatprep.subr.bf16.mxu0 0
        %2001 = vmatpush2.bf16.msra.mxu0 0
        %2002 = vmatprep.mubr.bf16.mxu0 0
        %2003 = vmatmul.mubr.bf16.gmra.mxu0 %v1964
        %v2004 = vpop.f32.mrf.mxu0
        %v2005 = vadd.f32 0.0, %v2004
        %v2006 = vpop.f32.mrf.mxu0
        %v2007 = vpop.f32.mrf.mxu0
        %v2008 = vpop.f32.mrf.mxu0
        %2009 = vdwg.mxu0
        %v2011 = vsel %vm1514, %v1956, 0
        %v2014 = vsel %vm1966, %v1507, 0
        %2016 = vmatprep.subr.bf16.mxu0 0
        %2017 = vmatpush1.bf16.msra.mxu0 0
        %2018 = vmatprep.subr.bf16.mxu0 0
        %2019 = vmatpush1.bf16.msra.mxu0 0
        %2020 = vmatprep.subr.bf16.mxu0 0
        %2021 = vmatpush1.bf16.msra.mxu0 0
        %2022 = vmatprep.subr.bf16.mxu0 0
        %2023 = vmatpush1.bf16.msra.mxu0 0
        %2024 = vmatprep.subr.bf16.mxu0 0
        %2025 = vmatpush1.bf16.msra.mxu0 0
        %2026 = vmatprep.subr.bf16.mxu0 0
        %2027 = vmatpush1.bf16.msra.mxu0 0
        %2028 = vmatprep.subr.bf16.mxu0 0
        %2029 = vmatpush1.bf16.msra.mxu0 0
        %2030 = vmatprep.subr.bf16.mxu0 0
        %2031 = vmatpush1.bf16.msra.mxu0 %v2014
        %2032 = vmatprep.subr.bf16.mxu0 0
        %2033 = vmatpush2.bf16.msra.mxu0 0
        %2034 = vmatprep.subr.bf16.mxu0 0
        %2035 = vmatpush2.bf16.msra.mxu0 0
        %2036 = vmatprep.subr.bf16.mxu0 0
        %2037 = vmatpush2.bf16.msra.mxu0 0
        %2038 = vmatprep.subr.bf16.mxu0 0
        %2039 = vmatpush2.bf16.msra.mxu0 0
        %2040 = vmatprep.subr.bf16.mxu0 0
        %2041 = vmatpush2.bf16.msra.mxu0 0
        %2042 = vmatprep.subr.bf16.mxu0 0
        %2043 = vmatpush2.bf16.msra.mxu0 0
        %2044 = vmatprep.subr.bf16.mxu0 0
        %2045 = vmatpush2.bf16.msra.mxu0 0
        %2046 = vmatprep.subr.bf16.mxu0 0
        %2047 = vmatpush2.bf16.msra.mxu0 0
        %2048 = vmatprep.mubr.bf16.mxu0 0
        %2049 = vmatmul.mubr.bf16.gmra.mxu0 %v2011
        %v2050 = vpop.f32.mrf.mxu0
        %v2051 = vadd.f32 0.0, %v2050
        %v2052 = vpop.f32.mrf.mxu0
        %v2053 = vpop.f32.mrf.mxu0
        %v2054 = vpop.f32.mrf.mxu0
        %2055 = vdwg.mxu0
        %v2057 = vsel %vm1514, %v1957, 0
        %v2060 = vsel %vm1966, %v1508, 0
        %2062 = vmatprep.subr.bf16.mxu0 0
        %2063 = vmatpush1.bf16.msra.mxu0 0
        %2064 = vmatprep.subr.bf16.mxu0 0
        %2065 = vmatpush1.bf16.msra.mxu0 0
        %2066 = vmatprep.subr.bf16.mxu0 0
        %2067 = vmatpush1.bf16.msra.mxu0 0
        %2068 = vmatprep.subr.bf16.mxu0 0
        %2069 = vmatpush1.bf16.msra.mxu0 0
        %2070 = vmatprep.subr.bf16.mxu0 0
        %2071 = vmatpush1.bf16.msra.mxu0 0
        %2072 = vmatprep.subr.bf16.mxu0 0
        %2073 = vmatpush1.bf16.msra.mxu0 0
        %2074 = vmatprep.subr.bf16.mxu0 0
        %2075 = vmatpush1.bf16.msra.mxu0 0
        %2076 = vmatprep.subr.bf16.mxu0 0
        %2077 = vmatpush1.bf16.msra.mxu0 %v2060
        %2078 = vmatprep.subr.bf16.mxu0 0
        %2079 = vmatpush2.bf16.msra.mxu0 0
        %2080 = vmatprep.subr.bf16.mxu0 0
        %2081 = vmatpush2.bf16.msra.mxu0 0
        %2082 = vmatprep.subr.bf16.mxu0 0
        %2083 = vmatpush2.bf16.msra.mxu0 0
        %2084 = vmatprep.subr.bf16.mxu0 0
        %2085 = vmatpush2.bf16.msra.mxu0 0
        %2086 = vmatprep.subr.bf16.mxu0 0
        %2087 = vmatpush2.bf16.msra.mxu0 0
        %2088 = vmatprep.subr.bf16.mxu0 0
        %2089 = vmatpush2.bf16.msra.mxu0 0
        %2090 = vmatprep.subr.bf16.mxu0 0
        %2091 = vmatpush2.bf16.msra.mxu0 0
        %2092 = vmatprep.subr.bf16.mxu0 0
        %2093 = vmatpush2.bf16.msra.mxu0 0
        %2094 = vmatprep.mubr.bf16.mxu0 0
        %2095 = vmatmul.mubr.bf16.gmra.mxu0 %v2057
        %v2096 = vpop.f32.mrf.mxu0
        %v2097 = vadd.f32 0.0, %v2096
        %v2098 = vpop.f32.mrf.mxu0
        %v2099 = vpop.f32.mrf.mxu0
        %v2100 = vpop.f32.mrf.mxu0
        %2101 = vdwg.mxu0
        %v2103 = vsel %vm1514, %v1958, 0
        %v2106 = vsel %vm1966, %v1509, 0
        %2108 = vmatprep.subr.bf16.mxu0 0
        %2109 = vmatpush1.bf16.msra.mxu0 0
        %2110 = vmatprep.subr.bf16.mxu0 0
        %2111 = vmatpush1.bf16.msra.mxu0 0
        %2112 = vmatprep.subr.bf16.mxu0 0
        %2113 = vmatpush1.bf16.msra.mxu0 0
        %2114 = vmatprep.subr.bf16.mxu0 0
        %2115 = vmatpush1.bf16.msra.mxu0 0
        %2116 = vmatprep.subr.bf16.mxu0 0
        %2117 = vmatpush1.bf16.msra.mxu0 0
        %2118 = vmatprep.subr.bf16.mxu0 0
        %2119 = vmatpush1.bf16.msra.mxu0 0
        %2120 = vmatprep.subr.bf16.mxu0 0
        %2121 = vmatpush1.bf16.msra.mxu0 0
        %2122 = vmatprep.subr.bf16.mxu0 0
        %2123 = vmatpush1.bf16.msra.mxu0 %v2106
        %2124 = vmatprep.subr.bf16.mxu0 0
        %2125 = vmatpush2.bf16.msra.mxu0 0
        %2126 = vmatprep.subr.bf16.mxu0 0
        %2127 = vmatpush2.bf16.msra.mxu0 0
        %2128 = vmatprep.subr.bf16.mxu0 0
        %2129 = vmatpush2.bf16.msra.mxu0 0
        %2130 = vmatprep.subr.bf16.mxu0 0
        %2131 = vmatpush2.bf16.msra.mxu0 0
        %2132 = vmatprep.subr.bf16.mxu0 0
        %2133 = vmatpush2.bf16.msra.mxu0 0
        %2134 = vmatprep.subr.bf16.mxu0 0
        %2135 = vmatpush2.bf16.msra.mxu0 0
        %2136 = vmatprep.subr.bf16.mxu0 0
        %2137 = vmatpush2.bf16.msra.mxu0 0
        %2138 = vmatprep.subr.bf16.mxu0 0
        %2139 = vmatpush2.bf16.msra.mxu0 0
        %2140 = vmatprep.mubr.bf16.mxu0 0
        %2141 = vmatmul.mubr.bf16.gmra.mxu0 %v2103
        %v2142 = vpop.f32.mrf.mxu0
        %v2143 = vadd.f32 0.0, %v2142
        %v2144 = vpop.f32.mrf.mxu0
        %v2145 = vpop.f32.mrf.mxu0
        %v2146 = vpop.f32.mrf.mxu0
        %2147 = vdwg.mxu0
        %v2149 = vsel %vm1514, %v1959, 0
        %v2152 = vsel %vm1966, %v1510, 0
        %2154 = vmatprep.subr.bf16.mxu0 0
        %2155 = vmatpush1.bf16.msra.mxu0 0
        %2156 = vmatprep.subr.bf16.mxu0 0
        %2157 = vmatpush1.bf16.msra.mxu0 0
        %2158 = vmatprep.subr.bf16.mxu0 0
        %2159 = vmatpush1.bf16.msra.mxu0 0
        %2160 = vmatprep.subr.bf16.mxu0 0
        %2161 = vmatpush1.bf16.msra.mxu0 0
        %2162 = vmatprep.subr.bf16.mxu0 0
        %2163 = vmatpush1.bf16.msra.mxu0 0
        %2164 = vmatprep.subr.bf16.mxu0 0
        %2165 = vmatpush1.bf16.msra.mxu0 0
        %2166 = vmatprep.subr.bf16.mxu0 0
        %2167 = vmatpush1.bf16.msra.mxu0 0
        %2168 = vmatprep.subr.bf16.mxu0 0
        %2169 = vmatpush1.bf16.msra.mxu0 %v2152
        %2170 = vmatprep.subr.bf16.mxu0 0
        %2171 = vmatpush2.bf16.msra.mxu0 0
        %2172 = vmatprep.subr.bf16.mxu0 0
        %2173 = vmatpush2.bf16.msra.mxu0 0
        %2174 = vmatprep.subr.bf16.mxu0 0
        %2175 = vmatpush2.bf16.msra.mxu0 0
        %2176 = vmatprep.subr.bf16.mxu0 0
        %2177 = vmatpush2.bf16.msra.mxu0 0
        %2178 = vmatprep.subr.bf16.mxu0 0
        %2179 = vmatpush2.bf16.msra.mxu0 0
        %2180 = vmatprep.subr.bf16.mxu0 0
        %2181 = vmatpush2.bf16.msra.mxu0 0
        %2182 = vmatprep.subr.bf16.mxu0 0
        %2183 = vmatpush2.bf16.msra.mxu0 0
        %2184 = vmatprep.subr.bf16.mxu0 0
        %2185 = vmatpush2.bf16.msra.mxu0 0
        %2186 = vmatprep.mubr.bf16.mxu0 0
        %2187 = vmatmul.mubr.bf16.gmra.mxu0 %v2149
        %v2188 = vpop.f32.mrf.mxu0
        %v2189 = vadd.f32 0.0, %v2188
        %v2190 = vpop.f32.mrf.mxu0
        %v2191 = vpop.f32.mrf.mxu0
        %v2192 = vpop.f32.mrf.mxu0
        %2193 = vdwg.mxu0
        %v2195 = vsel %vm1514, %v1960, 0
        %v2198 = vsel %vm1966, %v1511, 0
        %2200 = vmatprep.subr.bf16.mxu0 0
        %2201 = vmatpush1.bf16.msra.mxu0 0
        %2202 = vmatprep.subr.bf16.mxu0 0
        %2203 = vmatpush1.bf16.msra.mxu0 0
        %2204 = vmatprep.subr.bf16.mxu0 0
        %2205 = vmatpush1.bf16.msra.mxu0 0
        %2206 = vmatprep.subr.bf16.mxu0 0
        %2207 = vmatpush1.bf16.msra.mxu0 0
        %2208 = vmatprep.subr.bf16.mxu0 0
        %2209 = vmatpush1.bf16.msra.mxu0 0
        %2210 = vmatprep.subr.bf16.mxu0 0
        %2211 = vmatpush1.bf16.msra.mxu0 0
        %2212 = vmatprep.subr.bf16.mxu0 0
        %2213 = vmatpush1.bf16.msra.mxu0 0
        %2214 = vmatprep.subr.bf16.mxu0 0
        %2215 = vmatpush1.bf16.msra.mxu0 %v2198
        %2216 = vmatprep.subr.bf16.mxu0 0
        %2217 = vmatpush2.bf16.msra.mxu0 0
        %2218 = vmatprep.subr.bf16.mxu0 0
        %2219 = vmatpush2.bf16.msra.mxu0 0
        %2220 = vmatprep.subr.bf16.mxu0 0
        %2221 = vmatpush2.bf16.msra.mxu0 0
        %2222 = vmatprep.subr.bf16.mxu0 0
        %2223 = vmatpush2.bf16.msra.mxu0 0
        %2224 = vmatprep.subr.bf16.mxu0 0
        %2225 = vmatpush2.bf16.msra.mxu0 0
        %2226 = vmatprep.subr.bf16.mxu0 0
        %2227 = vmatpush2.bf16.msra.mxu0 0
        %2228 = vmatprep.subr.bf16.mxu0 0
        %2229 = vmatpush2.bf16.msra.mxu0 0
        %2230 = vmatprep.subr.bf16.mxu0 0
        %2231 = vmatpush2.bf16.msra.mxu0 0
        %2232 = vmatprep.mubr.bf16.mxu0 0
        %2233 = vmatmul.mubr.bf16.gmra.mxu0 %v2195
        %v2234 = vpop.f32.mrf.mxu0
        %v2235 = vadd.f32 0.0, %v2234
        %v2236 = vpop.f32.mrf.mxu0
        %v2237 = vpop.f32.mrf.mxu0
        %v2238 = vpop.f32.mrf.mxu0
        %2239 = vdwg.mxu0
        %v2241 = vsel %vm1514, %v1961, 0
        %v2244 = vsel %vm1966, %v1512, 0
        %2246 = vmatprep.subr.bf16.mxu0 0
        %2247 = vmatpush1.bf16.msra.mxu0 0
        %2248 = vmatprep.subr.bf16.mxu0 0
        %2249 = vmatpush1.bf16.msra.mxu0 0
        %2250 = vmatprep.subr.bf16.mxu0 0
        %2251 = vmatpush1.bf16.msra.mxu0 0
        %2252 = vmatprep.subr.bf16.mxu0 0
        %2253 = vmatpush1.bf16.msra.mxu0 0
        %2254 = vmatprep.subr.bf16.mxu0 0
        %2255 = vmatpush1.bf16.msra.mxu0 0
        %2256 = vmatprep.subr.bf16.mxu0 0
        %2257 = vmatpush1.bf16.msra.mxu0 0
        %2258 = vmatprep.subr.bf16.mxu0 0
        %2259 = vmatpush1.bf16.msra.mxu0 0
        %2260 = vmatprep.subr.bf16.mxu0 0
        %2261 = vmatpush1.bf16.msra.mxu0 %v2244
        %2262 = vmatprep.subr.bf16.mxu0 0
        %2263 = vmatpush2.bf16.msra.mxu0 0
        %2264 = vmatprep.subr.bf16.mxu0 0
        %2265 = vmatpush2.bf16.msra.mxu0 0
        %2266 = vmatprep.subr.bf16.mxu0 0
        %2267 = vmatpush2.bf16.msra.mxu0 0
        %2268 = vmatprep.subr.bf16.mxu0 0
        %2269 = vmatpush2.bf16.msra.mxu0 0
        %2270 = vmatprep.subr.bf16.mxu0 0
        %2271 = vmatpush2.bf16.msra.mxu0 0
        %2272 = vmatprep.subr.bf16.mxu0 0
        %2273 = vmatpush2.bf16.msra.mxu0 0
        %2274 = vmatprep.subr.bf16.mxu0 0
        %2275 = vmatpush2.bf16.msra.mxu0 0
        %2276 = vmatprep.subr.bf16.mxu0 0
        %2277 = vmatpush2.bf16.msra.mxu0 0
        %2278 = vmatprep.mubr.bf16.mxu0 0
        %2279 = vmatmul.mubr.bf16.gmra.mxu0 %v2241
        %v2280 = vpop.f32.mrf.mxu0
        %v2281 = vadd.f32 0.0, %v2280
        %v2282 = vpop.f32.mrf.mxu0
        %v2283 = vpop.f32.mrf.mxu0
        %v2284 = vpop.f32.mrf.mxu0
        %2285 = vdwg.mxu0
        %v2287 = vsel %vm1514, %v1962, 0
        %v2290 = vsel %vm1966, %v1513, 0
        %2292 = vmatprep.subr.bf16.mxu0 0
        %2293 = vmatpush1.bf16.msra.mxu0 0
        %2294 = vmatprep.subr.bf16.mxu0 0
        %2295 = vmatpush1.bf16.msra.mxu0 0
        %2296 = vmatprep.subr.bf16.mxu0 0
        %2297 = vmatpush1.bf16.msra.mxu0 0
        %2298 = vmatprep.subr.bf16.mxu0 0
        %2299 = vmatpush1.bf16.msra.mxu0 0
        %2300 = vmatprep.subr.bf16.mxu0 0
        %2301 = vmatpush1.bf16.msra.mxu0 0
        %2302 = vmatprep.subr.bf16.mxu0 0
        %2303 = vmatpush1.bf16.msra.mxu0 0
        %2304 = vmatprep.subr.bf16.mxu0 0
        %2305 = vmatpush1.bf16.msra.mxu0 0
        %2306 = vmatprep.subr.bf16.mxu0 0
        %2307 = vmatpush1.bf16.msra.mxu0 %v2290
        %2308 = vmatprep.subr.bf16.mxu0 0
        %2309 = vmatpush2.bf16.msra.mxu0 0
        %2310 = vmatprep.subr.bf16.mxu0 0
        %2311 = vmatpush2.bf16.msra.mxu0 0
        %2312 = vmatprep.subr.bf16.mxu0 0
        %2313 = vmatpush2.bf16.msra.mxu0 0
        %2314 = vmatprep.subr.bf16.mxu0 0
        %2315 = vmatpush2.bf16.msra.mxu0 0
        %2316 = vmatprep.subr.bf16.mxu0 0
        %2317 = vmatpush2.bf16.msra.mxu0 0
        %2318 = vmatprep.subr.bf16.mxu0 0
        %2319 = vmatpush2.bf16.msra.mxu0 0
        %2320 = vmatprep.subr.bf16.mxu0 0
        %2321 = vmatpush2.bf16.msra.mxu0 0
        %2322 = vmatprep.subr.bf16.mxu0 0
        %2323 = vmatpush2.bf16.msra.mxu0 0
        %2324 = vmatprep.mubr.bf16.mxu0 0
        %2325 = vmatmul.mubr.bf16.gmra.mxu0 %v2287
        %v2326 = vpop.f32.mrf.mxu0
        %v2327 = vadd.f32 0.0, %v2326
        %v2328 = vpop.f32.mrf.mxu0
        %v2329 = vpop.f32.mrf.mxu0
        %v2330 = vpop.f32.mrf.mxu0
        %2331 = vdwg.mxu0
        %v2332 = vrcp.pop %v1933
        %v2333 = vrcp.pop %v1936
        %v2334 = vrcp.pop %v1939
        %v2335 = vrcp.pop %v1942
        %v2336 = vrcp.pop %v1945
        %v2337 = vrcp.pop %v1948
        %v2338 = vrcp.pop %v1951
        %v2339 = vrcp.pop %v1954
        %v2340 = vmul.f32 %v2005, %v2332
        %v2341 = vmul.f32 %v2051, %v2333
        %v2342 = vmul.f32 %v2097, %v2334
        %v2343 = vmul.f32 %v2143, %v2335
        %v2344 = vmul.f32 %v2189, %v2336
        %v2345 = vmul.f32 %v2235, %v2337
        %v2346 = vmul.f32 %v2281, %v2338
        %v2347 = vmul.f32 %v2327, %v2339
        %v2348 = vcombine.low %v2340, %v2342
        %v2349 = vcombine.high %v2340, %v2342
        %v2351 = vunpack.c.l.s4 1983009808
        %v2352 = vunpack.c.0.s8 %v2351
        %v2353 = vlaneseq
        %v2354 = vshrl.u32 %v2353, 7
        %v2355 = vsub.s32 %v2352, %v2354
        %v2356 = vrot.slane %v2348, %v2355
        %v2358 = vunpack.c.l.s4 1983009808
        %v2359 = vunpack.c.0.s8 %v2358
        %v2360 = vlaneseq
        %v2361 = vshrl.u32 %v2360, 7
        %v2362 = vsub.s32 %v2359, %v2361
        %v2363 = vrot.slane %v2349, %v2362
        %v2364 = vcombine.low %v2341, %v2343
        %v2365 = vcombine.high %v2341, %v2343
        %v2367 = vunpack.c.l.s4 1983009808
        %v2368 = vunpack.c.0.s8 %v2367
        %v2369 = vlaneseq
        %v2370 = vshrl.u32 %v2369, 7
        %v2371 = vsub.s32 %v2368, %v2370
        %v2372 = vrot.slane %v2364, %v2371
        %v2374 = vunpack.c.l.s4 1983009808
        %v2375 = vunpack.c.0.s8 %v2374
        %v2376 = vlaneseq
        %v2377 = vshrl.u32 %v2376, 7
        %v2378 = vsub.s32 %v2375, %v2377
        %v2379 = vrot.slane %v2365, %v2378
        %v2380 = vcombine.low %v2356, %v2372
        %v2381 = vcombine.high %v2356, %v2372
        %v2383 = vunpack.c.l.s4 1934713408
        %v2384 = vunpack.c.0.s8 %v2383
        %v2385 = vlaneseq
        %v2386 = vshrl.u32 %v2385, 7
        %v2387 = vsub.s32 %v2384, %v2386
        %v2388 = vrot.slane %v2380, %v2387
        %v2390 = vunpack.c.l.s4 1934713408
        %v2391 = vunpack.c.0.s8 %v2390
        %v2392 = vlaneseq
        %v2393 = vshrl.u32 %v2392, 7
        %v2394 = vsub.s32 %v2391, %v2393
        %v2395 = vrot.slane %v2381, %v2394
        %v2396 = vcombine.low %v2363, %v2379
        %v2397 = vcombine.high %v2363, %v2379
        %v2399 = vunpack.c.l.s4 1934713408
        %v2400 = vunpack.c.0.s8 %v2399
        %v2401 = vlaneseq
        %v2402 = vshrl.u32 %v2401, 7
        %v2403 = vsub.s32 %v2400, %v2402
        %v2404 = vrot.slane %v2396, %v2403
        %v2406 = vunpack.c.l.s4 1934713408
        %v2407 = vunpack.c.0.s8 %v2406
        %v2408 = vlaneseq
        %v2409 = vshrl.u32 %v2408, 7
        %v2410 = vsub.s32 %v2407, %v2409
        %v2411 = vrot.slane %v2397, %v2410
        %v2412 = vcombine.high %v2388, 0.0
        %v2413 = vcombine.high %v2395, 0.0
        %v2414 = vcombine.high %v2404, 0.0
        %v2415 = vcombine.high %v2411, 0.0
        %v2416 = vcombine.low %v2344, %v2346
        %v2417 = vcombine.high %v2344, %v2346
        %v2419 = vunpack.c.l.s4 1983009808
        %v2420 = vunpack.c.0.s8 %v2419
        %v2421 = vlaneseq
        %v2422 = vshrl.u32 %v2421, 7
        %v2423 = vsub.s32 %v2420, %v2422
        %v2424 = vrot.slane %v2416, %v2423
        %v2426 = vunpack.c.l.s4 1983009808
        %v2427 = vunpack.c.0.s8 %v2426
        %v2428 = vlaneseq
        %v2429 = vshrl.u32 %v2428, 7
        %v2430 = vsub.s32 %v2427, %v2429
        %v2431 = vrot.slane %v2417, %v2430
        %v2432 = vcombine.low %v2345, %v2347
        %v2433 = vcombine.high %v2345, %v2347
        %v2435 = vunpack.c.l.s4 1983009808
        %v2436 = vunpack.c.0.s8 %v2435
        %v2437 = vlaneseq
        %v2438 = vshrl.u32 %v2437, 7
        %v2439 = vsub.s32 %v2436, %v2438
        %v2440 = vrot.slane %v2432, %v2439
        %v2442 = vunpack.c.l.s4 1983009808
        %v2443 = vunpack.c.0.s8 %v2442
        %v2444 = vlaneseq
        %v2445 = vshrl.u32 %v2444, 7
        %v2446 = vsub.s32 %v2443, %v2445
        %v2447 = vrot.slane %v2433, %v2446
        %v2448 = vcombine.low %v2424, %v2440
        %v2449 = vcombine.high %v2424, %v2440
        %v2451 = vunpack.c.l.s4 1934713408
        %v2452 = vunpack.c.0.s8 %v2451
        %v2453 = vlaneseq
        %v2454 = vshrl.u32 %v2453, 7
        %v2455 = vsub.s32 %v2452, %v2454
        %v2456 = vrot.slane %v2448, %v2455
        %v2458 = vunpack.c.l.s4 1934713408
        %v2459 = vunpack.c.0.s8 %v2458
        %v2460 = vlaneseq
        %v2461 = vshrl.u32 %v2460, 7
        %v2462 = vsub.s32 %v2459, %v2461
        %v2463 = vrot.slane %v2449, %v2462
        %v2464 = vcombine.low %v2431, %v2447
        %v2465 = vcombine.high %v2431, %v2447
        %v2467 = vunpack.c.l.s4 1934713408
        %v2468 = vunpack.c.0.s8 %v2467
        %v2469 = vlaneseq
        %v2470 = vshrl.u32 %v2469, 7
        %v2471 = vsub.s32 %v2468, %v2470
        %v2472 = vrot.slane %v2464, %v2471
        %v2474 = vunpack.c.l.s4 1934713408
        %v2475 = vunpack.c.0.s8 %v2474
        %v2476 = vlaneseq
        %v2477 = vshrl.u32 %v2476, 7
        %v2478 = vsub.s32 %v2475, %v2477
        %v2479 = vrot.slane %v2465, %v2478
        %v2480 = vcombine.high %v2456, 0.0
        %v2481 = vcombine.high %v2463, 0.0
        %v2482 = vcombine.high %v2472, 0.0
        %v2483 = vcombine.high %v2479, 0.0
        %v2484 = vcombine.low %v2388, %v2395
        %v2486 = vunpack.c.l.s4 1983009808
        %v2487 = vunpack.c.0.s8 %v2486
        %v2488 = vlaneseq
        %v2489 = vshrl.u32 %v2488, 7
        %v2490 = vsub.s32 %v2487, %v2489
        %v2491 = vrot.slane %v2484, %v2490
        %v2492 = vcombine.low %v2412, %v2413
        %v2494 = vunpack.c.l.s4 1983009808
        %v2495 = vunpack.c.0.s8 %v2494
        %v2496 = vlaneseq
        %v2497 = vshrl.u32 %v2496, 7
        %v2498 = vsub.s32 %v2495, %v2497
        %v2499 = vrot.slane %v2492, %v2498
        %v2500 = vcombine.low %v2404, %v2411
        %v2502 = vunpack.c.l.s4 1983009808
        %v2503 = vunpack.c.0.s8 %v2502
        %v2504 = vlaneseq
        %v2505 = vshrl.u32 %v2504, 7
        %v2506 = vsub.s32 %v2503, %v2505
        %v2507 = vrot.slane %v2500, %v2506
        %v2508 = vcombine.low %v2414, %v2415
        %v2510 = vunpack.c.l.s4 1983009808
        %v2511 = vunpack.c.0.s8 %v2510
        %v2512 = vlaneseq
        %v2513 = vshrl.u32 %v2512, 7
        %v2514 = vsub.s32 %v2511, %v2513
        %v2515 = vrot.slane %v2508, %v2514
        %v2516 = vcombine.low %v2491, %v2499
        %v2517 = vcombine.high %v2491, %v2499
        %v2519 = vunpack.c.l.s4 1934713408
        %v2520 = vunpack.c.0.s8 %v2519
        %v2521 = vlaneseq
        %v2522 = vshrl.u32 %v2521, 7
        %v2523 = vsub.s32 %v2520, %v2522
        %v2524 = vrot.slane %v2516, %v2523
        %v2526 = vunpack.c.l.s4 1934713408
        %v2527 = vunpack.c.0.s8 %v2526
        %v2528 = vlaneseq
        %v2529 = vshrl.u32 %v2528, 7
        %v2530 = vsub.s32 %v2527, %v2529
        %v2531 = vrot.slane %v2517, %v2530
        %v2532 = vcombine.low %v2507, %v2515
        %v2533 = vcombine.high %v2507, %v2515
        %v2535 = vunpack.c.l.s4 1934713408
        %v2536 = vunpack.c.0.s8 %v2535
        %v2537 = vlaneseq
        %v2538 = vshrl.u32 %v2537, 7
        %v2539 = vsub.s32 %v2536, %v2538
        %v2540 = vrot.slane %v2532, %v2539
        %v2542 = vunpack.c.l.s4 1934713408
        %v2543 = vunpack.c.0.s8 %v2542
        %v2544 = vlaneseq
        %v2545 = vshrl.u32 %v2544, 7
        %v2546 = vsub.s32 %v2543, %v2545
        %v2547 = vrot.slane %v2533, %v2546
        %v2548 = vcombine.low %v2524, %v2540
        %v2549 = vcombine.high %v2524, %v2540
        %v2550 = vcombine.low %v2531, %v2547
        %v2551 = vcombine.high %v2531, %v2547
        %v2552 = vcombine.low %v2456, %v2463
        %v2554 = vunpack.c.l.s4 1983009808
        %v2555 = vunpack.c.0.s8 %v2554
        %v2556 = vlaneseq
        %v2557 = vshrl.u32 %v2556, 7
        %v2558 = vsub.s32 %v2555, %v2557
        %v2559 = vrot.slane %v2552, %v2558
        %v2560 = vcombine.low %v2480, %v2481
        %v2562 = vunpack.c.l.s4 1983009808
        %v2563 = vunpack.c.0.s8 %v2562
        %v2564 = vlaneseq
        %v2565 = vshrl.u32 %v2564, 7
        %v2566 = vsub.s32 %v2563, %v2565
        %v2567 = vrot.slane %v2560, %v2566
        %v2568 = vcombine.low %v2472, %v2479
        %v2570 = vunpack.c.l.s4 1983009808
        %v2571 = vunpack.c.0.s8 %v2570
        %v2572 = vlaneseq
        %v2573 = vshrl.u32 %v2572, 7
        %v2574 = vsub.s32 %v2571, %v2573
        %v2575 = vrot.slane %v2568, %v2574
        %v2576 = vcombine.low %v2482, %v2483
        %v2578 = vunpack.c.l.s4 1983009808
        %v2579 = vunpack.c.0.s8 %v2578
        %v2580 = vlaneseq
        %v2581 = vshrl.u32 %v2580, 7
        %v2582 = vsub.s32 %v2579, %v2581
        %v2583 = vrot.slane %v2576, %v2582
        %v2584 = vcombine.low %v2559, %v2567
        %v2585 = vcombine.high %v2559, %v2567
        %v2587 = vunpack.c.l.s4 1934713408
        %v2588 = vunpack.c.0.s8 %v2587
        %v2589 = vlaneseq
        %v2590 = vshrl.u32 %v2589, 7
        %v2591 = vsub.s32 %v2588, %v2590
        %v2592 = vrot.slane %v2584, %v2591
        %v2594 = vunpack.c.l.s4 1934713408
        %v2595 = vunpack.c.0.s8 %v2594
        %v2596 = vlaneseq
        %v2597 = vshrl.u32 %v2596, 7
        %v2598 = vsub.s32 %v2595, %v2597
        %v2599 = vrot.slane %v2585, %v2598
        %v2600 = vcombine.low %v2575, %v2583
        %v2601 = vcombine.high %v2575, %v2583
        %v2603 = vunpack.c.l.s4 1934713408
        %v2604 = vunpack.c.0.s8 %v2603
        %v2605 = vlaneseq
        %v2606 = vshrl.u32 %v2605, 7
        %v2607 = vsub.s32 %v2604, %v2606
        %v2608 = vrot.slane %v2600, %v2607
        %v2610 = vunpack.c.l.s4 1934713408
        %v2611 = vunpack.c.0.s8 %v2610
        %v2612 = vlaneseq
        %v2613 = vshrl.u32 %v2612, 7
        %v2614 = vsub.s32 %v2611, %v2613
        %v2615 = vrot.slane %v2601, %v2614
        %v2616 = vcombine.low %v2592, %v2608
        %v2617 = vcombine.high %v2592, %v2608
        %v2618 = vcombine.low %v2599, %v2615
        %v2619 = vcombine.high %v2599, %v2615
        %2622 = vrot.lane.b32.xlu0 %v2549, 8
        %v2623 = vpop.permute.xlu0 %2622
        %2624 = vrot.lane.b32.xlu0 %v2617, 8
        %v2625 = vpop.permute.xlu0 %2624
        %2630 = vrot.lane.b32.xlu0 %v2550, 16
        %v2631 = vpop.permute.xlu0 %2630
        %2632 = vrot.lane.b32.xlu0 %v2618, 16
        %v2633 = vpop.permute.xlu0 %2632
        %2638 = vrot.lane.b32.xlu0 %v2551, 24
        %v2639 = vpop.permute.xlu0 %2638
        %2640 = vrot.lane.b32.xlu0 %v2619, 24
        %v2641 = vpop.permute.xlu0 %2640
        %v2644 = vsel %vm1514, %v2548, %v2623
        %v2645 = vsel %vm1514, %v2616, %v2625
        %vm2646 = vcmask 130048
        %v2647 = vsel %vm2646, %v2644, %v2631
        %v2648 = vsel %vm2646, %v2645, %v2633
        %vm2649 = vcmask 195584
        %v2650 = vsel %vm2649, %v2647, %v2639
        %v2651 = vsel %vm2649, %v2648, %v2641
        %v2652 = vpack.c.bf16 %v2651, %v2650
        %v2657 = vunpack.c.l.b16 %v602
        %v2658 = vunpack.c.l.b16 %v603
        %v2659 = vunpack.c.l.b16 %v604
        %v2660 = vunpack.c.l.b16 %v605
        %v2661 = vpack.c.b16 %v2658, %v2657
        %v2662 = vpack.c.b16 %v2660, %v2659
        %v2664 = vsel %vm450, %v2652, 0
        %v2667 = vsel %vm450, %v2661, 0
        %v2670 = vsel %vm450, %v2662, 0
        %2672 = vmatprep.subr.bf16.mxu0 0
        %2673 = vmatpush1.bf16.xpose.msra.mxu0 0
        %2674 = vmatprep.subr.bf16.mxu0 0
        %2675 = vmatpush1.bf16.xpose.msra.mxu0 0
        %2676 = vmatprep.subr.bf16.mxu0 0
        %2677 = vmatpush1.bf16.xpose.msra.mxu0 0
        %2678 = vmatprep.subr.bf16.mxu0 0
        %2679 = vmatpush1.bf16.xpose.msra.mxu0 0
        %2680 = vmatprep.subr.bf16.mxu0 0
        %2681 = vmatpush1.bf16.xpose.msra.mxu0 0
        %2682 = vmatprep.subr.bf16.mxu0 0
        %2683 = vmatpush1.bf16.xpose.msra.mxu0 0
        %2684 = vmatprep.subr.bf16.mxu0 0
        %2685 = vmatpush1.bf16.xpose.msra.mxu0 %v2670
        %2686 = vmatprep.subr.bf16.mxu0 0
        %2687 = vmatpush1.bf16.xpose.msra.mxu0 %v2667
        %2688 = vmatprep.subr.bf16.mxu0 0
        %2689 = vmatpush2.bf16.xpose.msra.mxu0 0
        %2690 = vmatprep.subr.bf16.mxu0 0
        %2691 = vmatpush2.bf16.xpose.msra.mxu0 0
        %2692 = vmatprep.subr.bf16.mxu0 0
        %2693 = vmatpush2.bf16.xpose.msra.mxu0 0
        %2694 = vmatprep.subr.bf16.mxu0 0
        %2695 = vmatpush2.bf16.xpose.msra.mxu0 0
        %2696 = vmatprep.subr.bf16.mxu0 0
        %2697 = vmatpush2.bf16.xpose.msra.mxu0 0
        %2698 = vmatprep.subr.bf16.mxu0 0
        %2699 = vmatpush2.bf16.xpose.msra.mxu0 0
        %2700 = vmatprep.subr.bf16.mxu0 0
        %2701 = vmatpush2.bf16.xpose.msra.mxu0 0
        %2702 = vmatprep.subr.bf16.mxu0 0
        %2703 = vmatpush2.bf16.xpose.msra.mxu0 0
        %2704 = vmatprep.mubr.bf16.mxu0 0
        %2705 = vmatmul.mubr.bf16.gmra.mxu0 %v2664
        %v2706 = vpop.f32.mrf.mxu0
        %v2707 = vadd.f32 0.0, %v2706
        %v2708 = vpop.f32.mrf.mxu0
        %v2709 = vpop.f32.mrf.mxu0
        %v2710 = vadd.f32 0.0, %v2709
        %v2711 = vpop.f32.mrf.mxu0
        %2712 = vdwg.mxu0
        %v2713 = vadd.f32 %v447, %v2707
        %v2714 = vadd.f32 %v448, %v2710
        %v2715 = vlaneseq
        %v2716 = vshrl.u32 %v2715, 7
        %v2717 = vsub.s32 2, %v2716
        %v2718 = vrot.slane %v449, %v2717
        %v2719 = vadd.f32 %v2713, %v2718
        %v2720 = vadd.f32 %v2714, %v2718
        %v2721 = vsel %vm450, %v2719, 0.0
        %2722 = vadd.xlane.f32.xlu0 %v2721
        %v2723 = vpop.xlane.xlu0 %2722
        %v2724 = vsel %vm450, %v2720, 0.0
        %2725 = vadd.xlane.f32.xlu0 %v2724
        %v2726 = vpop.xlane.xlu0 %2725
        %v2727 = vmul.f32 %v2723, %v457
        %v2728 = vmul.f32 %v2726, %v457
        %v2729 = vsub.f32 %v2719, %v2727
        %v2730 = vsub.f32 %v2720, %v2728
        %v2731 = vmul.f32 %v2729, %v2729
        %v2732 = vmul.f32 %v2730, %v2730
        %v2733 = vsel %vm450, %v2731, 0.0
        %2734 = vadd.xlane.f32.xlu0 %v2733
        %v2735 = vpop.xlane.xlu0 %2734
        %v2736 = vsel %vm450, %v2732, 0.0
        %2737 = vadd.xlane.f32.xlu0 %v2736
        %v2738 = vpop.xlane.xlu0 %2737
        %v2739 = vmul.f32 %v2735, %v457
        %v2740 = vmul.f32 %v2738, %v457
        %v2741 = vadd.f32 %v2739, 1e-05
        %v2742 = vadd.f32 %v2740, 1e-05
        %v2743 = vrsqrt.pop %v2741
        %v2744 = vrsqrt.pop %v2742
        %v2745 = vmul.f32 %v2729, %v2743
        %v2746 = vmul.f32 %v2730, %v2744
        %v2747 = vlaneseq
        %v2748 = vshrl.u32 %v2747, 7
        %v2749 = vsub.s32 3, %v2748
        %v2750 = vrot.slane %v449, %v2749
        %v2751 = vmul.f32 %v2745, %v2750
        %v2752 = vmul.f32 %v2746, %v2750
        %v2753 = vlaneseq
        %v2754 = vshrl.u32 %v2753, 7
        %v2755 = vsub.s32 4, %v2754
        %v2756 = vrot.slane %v449, %v2755
        %v2757 = vadd.f32 %v2751, %v2756
        %v2758 = vadd.f32 %v2752, %v2756
        %v2759 = vpack.c.bf16 %v2758, %v2757
        %v2760 = vld [vmem:[%s420] sm:$0xf]
        %v2761 = vld [vmem:[%s420 + $0x4] sm:$0xf]
        %v2762 = vld [vmem:[%s420 + $0x8] sm:$0xf]
        %v2763 = vld [vmem:[%s420 + $0xc] sm:$0xf]
        %v2764 = vld [vmem:[%s420 + $0x10] sm:$0xf]
        %v2765 = vld [vmem:[%s420 + $0x14] sm:$0xf]
        %v2766 = vld [vmem:[%s420 + $0x18] sm:$0xf]
        %v2767 = vld [vmem:[%s420 + $0x1c] sm:$0xf]
        %v2768 = vld [vmem:[%s431] sm:$0x1]
        %v2770 = vlaneseq
        %v2771 = vshrl.u32 %v2770, 7
        %v2772 = vsub.s32 0, %v2771
        %v2773 = vrot.slane %v2768, %v2772
        %v2783 = vunpack.c.l.b16 %v2760
        %v2784 = vunpack.c.l.b16 %v2761
        %v2785 = vunpack.c.l.b16 %v2762
        %v2786 = vunpack.c.l.b16 %v2763
        %v2787 = vunpack.c.l.b16 %v2764
        %v2788 = vunpack.c.l.b16 %v2765
        %v2789 = vunpack.c.l.b16 %v2766
        %v2790 = vunpack.c.l.b16 %v2767
        %v2791 = vpack.c.b16 %v2784, %v2783
        %v2792 = vpack.c.b16 %v2786, %v2785
        %v2793 = vpack.c.b16 %v2788, %v2787
        %v2794 = vpack.c.b16 %v2790, %v2789
        %v2796 = vsel %vm450, %v2759, 0
        %v2799 = vsel %vm450, %v2791, 0
        %v2802 = vsel %vm450, %v2792, 0
        %v2805 = vsel %vm450, %v2793, 0
        %v2808 = vsel %vm450, %v2794, 0
        %2810 = vmatprep.subr.bf16.mxu0 0
        %2811 = vmatpush1.bf16.xpose.msra.mxu0 0
        %2812 = vmatprep.subr.bf16.mxu0 0
        %2813 = vmatpush1.bf16.xpose.msra.mxu0 0
        %2814 = vmatprep.subr.bf16.mxu0 0
        %2815 = vmatpush1.bf16.xpose.msra.mxu0 0
        %2816 = vmatprep.subr.bf16.mxu0 0
        %2817 = vmatpush1.bf16.xpose.msra.mxu0 0
        %2818 = vmatprep.subr.bf16.mxu0 0
        %2819 = vmatpush1.bf16.xpose.msra.mxu0 %v2808
        %2820 = vmatprep.subr.bf16.mxu0 0
        %2821 = vmatpush1.bf16.xpose.msra.mxu0 %v2805
        %2822 = vmatprep.subr.bf16.mxu0 0
        %2823 = vmatpush1.bf16.xpose.msra.mxu0 %v2802
        %2824 = vmatprep.subr.bf16.mxu0 0
        %2825 = vmatpush1.bf16.xpose.msra.mxu0 %v2799
        %2826 = vmatprep.subr.bf16.mxu0 0
        %2827 = vmatpush2.bf16.xpose.msra.mxu0 0
        %2828 = vmatprep.subr.bf16.mxu0 0
        %2829 = vmatpush2.bf16.xpose.msra.mxu0 0
        %2830 = vmatprep.subr.bf16.mxu0 0
        %2831 = vmatpush2.bf16.xpose.msra.mxu0 0
        %2832 = vmatprep.subr.bf16.mxu0 0
        %2833 = vmatpush2.bf16.xpose.msra.mxu0 0
        %2834 = vmatprep.subr.bf16.mxu0 0
        %2835 = vmatpush2.bf16.xpose.msra.mxu0 0
        %2836 = vmatprep.subr.bf16.mxu0 0
        %2837 = vmatpush2.bf16.xpose.msra.mxu0 0
        %2838 = vmatprep.subr.bf16.mxu0 0
        %2839 = vmatpush2.bf16.xpose.msra.mxu0 0
        %2840 = vmatprep.subr.bf16.mxu0 0
        %2841 = vmatpush2.bf16.xpose.msra.mxu0 0
        %2842 = vmatprep.mubr.bf16.mxu0 0
        %2843 = vmatmul.mubr.bf16.gmra.mxu0 %v2796
        %v2844 = vpop.f32.mrf.mxu0
        %v2845 = vadd.f32 %v2773, %v2844
        %v2846 = vpop.f32.mrf.mxu0
        %v2847 = vpop.f32.mrf.mxu0
        %v2848 = vadd.f32 %v2773, %v2847
        %v2849 = vpop.f32.mrf.mxu0
        %2850 = vdwg.mxu0
        %v2851 = vmax.f32 %v2845, 0.0
        %v2852 = vmax.f32 %v2848, 0.0
        %v2853 = vpack.c.bf16 %v2852, %v2851
        %v2854 = vld [vmem:[%s425] sm:$0xf]
        %v2855 = vld [vmem:[%s425 + $0x4] sm:$0xf]
        %v2856 = vld [vmem:[%s425 + $0x8] sm:$0xf]
        %v2857 = vld [vmem:[%s425 + $0xc] sm:$0xf]
        %v2862 = vunpack.c.l.b16 %v2854
        %v2863 = vunpack.c.l.b16 %v2855
        %v2864 = vunpack.c.l.b16 %v2856
        %v2865 = vunpack.c.l.b16 %v2857
        %v2866 = vpack.c.b16 %v2863, %v2862
        %v2867 = vpack.c.b16 %v2865, %v2864
        %vm2868 = vcmask 523264
        %v2870 = vsel %vm2868, %v2853, 0
        %v2873 = vsel %vm2868, %v2866, 0
        %v2876 = vsel %vm2868, %v2867, 0
        %2878 = vmatprep.subr.bf16.mxu0 0
        %2879 = vmatpush1.bf16.xpose.msra.mxu0 0
        %2880 = vmatprep.subr.bf16.mxu0 0
        %2881 = vmatpush1.bf16.xpose.msra.mxu0 0
        %2882 = vmatprep.subr.bf16.mxu0 0
        %2883 = vmatpush1.bf16.xpose.msra.mxu0 0
        %2884 = vmatprep.subr.bf16.mxu0 0
        %2885 = vmatpush1.bf16.xpose.msra.mxu0 0
        %2886 = vmatprep.subr.bf16.mxu0 0
        %2887 = vmatpush1.bf16.xpose.msra.mxu0 0
        %2888 = vmatprep.subr.bf16.mxu0 0
        %2889 = vmatpush1.bf16.xpose.msra.mxu0 0
        %2890 = vmatprep.subr.bf16.mxu0 0
        %2891 = vmatpush1.bf16.xpose.msra.mxu0 %v2876
        %2892 = vmatprep.subr.bf16.mxu0 0
        %2893 = vmatpush1.bf16.xpose.msra.mxu0 %v2873
        %2894 = vmatprep.subr.bf16.mxu0 0
        %2895 = vmatpush2.bf16.xpose.msra.mxu0 0
        %2896 = vmatprep.subr.bf16.mxu0 0
        %2897 = vmatpush2.bf16.xpose.msra.mxu0 0
        %2898 = vmatprep.subr.bf16.mxu0 0
        %2899 = vmatpush2.bf16.xpose.msra.mxu0 0
        %2900 = vmatprep.subr.bf16.mxu0 0
        %2901 = vmatpush2.bf16.xpose.msra.mxu0 0
        %2902 = vmatprep.subr.bf16.mxu0 0
        %2903 = vmatpush2.bf16.xpose.msra.mxu0 0
        %2904 = vmatprep.subr.bf16.mxu0 0
        %2905 = vmatpush2.bf16.xpose.msra.mxu0 0
        %2906 = vmatprep.subr.bf16.mxu0 0
        %2907 = vmatpush2.bf16.xpose.msra.mxu0 0
        %2908 = vmatprep.subr.bf16.mxu0 0
        %2909 = vmatpush2.bf16.xpose.msra.mxu0 0
        %2910 = vmatprep.mubr.bf16.mxu0 0
        %2911 = vmatmul.mubr.bf16.gmra.mxu0 %v2870
        %v2912 = vpop.f32.mrf.mxu0
        %v2913 = vadd.f32 0.0, %v2912
        %v2914 = vpop.f32.mrf.mxu0
        %v2915 = vpop.f32.mrf.mxu0
        %v2916 = vadd.f32 0.0, %v2915
        %v2917 = vpop.f32.mrf.mxu0
        %2918 = vdwg.mxu0
        %v2919 = vadd.f32 %v2719, %v2913
        %v2920 = vadd.f32 %v2720, %v2916
        %v2921 = vlaneseq
        %v2922 = vshrl.u32 %v2921, 7
        %v2923 = vsub.s32 5, %v2922
        %v2924 = vrot.slane %v449, %v2923
        %v2925 = vadd.f32 %v2919, %v2924
        %v2926 = vadd.f32 %v2920, %v2924
        %2927 = vst.msk [vmem:[#allocation2] sm:$0xff] %vm450, %v2925
        %2928 = vst.msk [vmem:[#allocation2 + $0x8] sm:$0xff] %vm450, %v2926
        // Predicated region
        $region57: #{tpu_custom_call.1} parent=51 // pred_check
          %p2929 = pneg %p258
        $region58: #{tpu_custom_call.1} parent=51 // pred_check_branch
          %2931 = sbr.rel (%p2929) target = $region60
        $region59: #{tpu_custom_call.1} parent=51 // pred_region
          %s2932 = smul.u32 2, %s24
          %s2934 = ssub.s32 256, 256
          %2935 = vsyncadd [#allocation3], %s2934
          %s2936 = smul.addr %s2932, 128
          %s2937 = scalar_lea.hbm %s8, %s2936
          %s2938 = sshll.u32 [#allocation2], 4
          %s2939 = int_to_ptr.vmem [resolvable:$true] %s2938
          %2944 = dma.vmem_to_hbm [thread:$0]  %s2939, 256, %s2937, [#allocation3], 128, 128, 8
        $region60: #{tpu_custom_call.1} parent=51 // pred_fallthru
          _
        // Predicated region
        $region61: #{tpu_custom_call.1} parent=51 // pred_check
          %p2945 = pneg %p258
        $region62: #{tpu_custom_call.1} parent=51 // pred_check_branch
          %2947 = sbr.rel (%p2945) target = $region64
        $region63: #{tpu_custom_call.1} parent=51 // pred_region
          %2948 = dma.done [#allocation3], 256
        $region64: #{tpu_custom_call.1} parent=51 // pred_fallthru
          _
      $region52: #{tpu_custom_call.1} parent=5 // pred_fallthru
        _
      %p2949 = scmp.le.s32.totalorder 2, %s15
      // Predicated region
      $region65: #{tpu_custom_call.1} parent=5 // pred_check
        %p2950 = pneg %p2949
      $region66: #{tpu_custom_call.1} parent=5 // pred_check_branch
        %2952 = sbr.rel (%p2950) target = $region68
      $region67: #{tpu_custom_call.1} parent=5 // pred_region
        %s2953 = ssub.s32 %s15, 2
      $region68: #{tpu_custom_call.1} parent=5 // pred_fallthru
        _
    $region6: #{tpu_custom_call.1} parent=1 // loop_footer
      %s19 = sadd.s32 1, %s15
    $region7: #{tpu_custom_call.1} parent=1 // loop_footer_branch
      %14 = sbr.rel target = $region3
    $region8: #{tpu_custom_call.1} parent=1 // loop_exit
      _
    %2954 = vsyncpa [#allocation3], 1
    %s2955 = scalar_lea.sflag [#allocation3], 1
    %2956 = vsyncpa %s2955, 1

</llo_original>
